<compile_context>
chip_gen: v5e
topology: v5e:2x2
jax: 0.10.0
libtpu: 0.0.40
codegen_flags: <defaults>
</compile_context>

<pallas_src>
import functools

import jax
import jax.numpy as jnp
from jax.experimental import pallas as pl
from jax.experimental.pallas import tpu as pltpu

_PAD = 8  # sublane-aligned left pad of the conv1 staging scratch


# ---------------------------------------------------------------------------
# Fused encoder-block kernel: conv3x3+ReLU -> conv3x3+ReLU -> maxpool2x2
# One grid step handles TH output rows of one image (plus a 1-row conv2 halo).
# ---------------------------------------------------------------------------
def _encoder_block_kernel(x_ref, w1_ref, b1_ref, w2_ref, b2_ref, *rest,
                          TH, W, C, has_max_pool):
    if has_max_pool:
        yenc_ref, ypool_ref, ypad_ref, ycat_ref, vmax_ref = rest
    else:
        yenc_ref, ypad_ref, ycat_ref = rest
    EXT = TH + 2  # TH output rows + 1 halo row above/below for conv2

    # ---- conv1: ONE folded matmul (K = 9*Cin), bias + ReLU ------------------
    y1 = jnp.dot(x_ref[...], w1_ref[...], preferred_element_type=jnp.float32)
    y1 = jnp.maximum(y1 + b1_ref[...], 0.0)                 # (EXT*W, C) f32

    # ---- stage conv1 rows (incl. halo) into the W-padded scratch ------------
    # Data lives in columns [_PAD, _PAD+W); only columns _PAD-1 and _PAD+W are
    # ever read as zeros, but they are re-zeroed every step via aligned 8-wide
    # stores (cheap, no persistence assumptions across grid steps / cores).
    ypad_ref[:, _PAD:_PAD + W, :] = y1.reshape(EXT, W, C)
    zpad = jnp.zeros((EXT, _PAD, C), jnp.float32)
    ypad_ref[:, 0:_PAD, :] = zpad
    ypad_ref[:, _PAD + W:_PAD + W + _PAD, :] = zpad

    # Halo rows that fall outside the image must be exact zeros (conv2 'same'
    # padding), not conv1-of-zero-patches.
    t = pl.program_id(1)
    zrow = jnp.zeros((1, ypad_ref.shape[1], C), jnp.float32)

    @pl.when(t == 0)
    def _():
        ypad_ref[0:1, :, :] = zrow

    @pl.when(t == pl.num_programs(1) - 1)
    def _():
        ypad_ref[EXT - 1:EXT, :, :] = zrow

    # ---- conv2: per-dy tap folding -> 3 matmuls with K = 3*C ----------------
    # ycat[(r, w), dx*C + c] = y1_padded[r, w + dx - 1, c]; the dy shift is a
    # (sublane-aligned) row offset of dy*W into the flat ycat buffer.
    pieces = [
        ypad_ref[:, _PAD - 1 + dx:_PAD - 1 + dx + W, :]
        .reshape(EXT * W, C).astype(jnp.bfloat16)
        for dx in range(3)
    ]
    ycat_ref[...] = jnp.concatenate(pieces, axis=-1)        # (EXT*W, 3*C) bf16

    y2 = jnp.dot(ycat_ref[0:TH * W, :], w2_ref[0],
                 preferred_element_type=jnp.float32)
    y2 = y2 + jnp.dot(ycat_ref[W:W + TH * W, :], w2_ref[1],
                      preferred_element_type=jnp.float32)
    y2 = y2 + jnp.dot(ycat_ref[2 * W:2 * W + TH * W, :], w2_ref[2],
                      preferred_element_type=jnp.float32)
    y2 = jnp.maximum(y2 + b2_ref[...], 0.0)                 # (TH*W, C) f32

    yenc_ref[...] = y2.reshape(TH, W, C)

    # ---- fused 2x2 / stride-2 max-pool (no HBM round trip) ------------------
    if has_max_pool:
        # Vertical pair-max: rows (2h, 2h+1) become the two sublane halves of
        # each (2W, C) slab after a layout-trivial reshape of the flat result.
        t3 = y2.reshape(TH // 2, 2 * W, C)
        vmax_ref[...] = jnp.maximum(t3[:, :W, :], t3[:, W:, :])   # (TH//2, W, C)
        # Horizontal pair-max via sublane-strided reads of the small scratch.
        left = vmax_ref[:, pl.ds(0, W // 2, 2), :]
        right = vmax_ref[:, pl.ds(1, W // 2, 2), :]
        ypool_ref[...] = jnp.maximum(left, right)                 # (TH//2, W//2, C)


# ---------------------------------------------------------------------------
# Wrapper-side im2col of conv1 into per-row-tile slabs (bf16, lane-dense-ish).
# ---------------------------------------------------------------------------
def _im2col_tiles(x_nchw, tile_h):
    n, cin, h, w = x_nchw.shape
    ext = tile_h + 2
    n_tiles = h // tile_h
    x = jnp.transpose(x_nchw, (0, 2, 3, 1)).astype(jnp.float32)      # NHWC
    xp = jnp.pad(x, ((0, 0), (1, 1), (1, 1), (0, 0)))                # conv1 halo
    taps = [xp[:, dy:dy + h, dx:dx + w, :]
            for dy in range(3) for dx in range(3)]
    patches = jnp.concatenate(taps, axis=-1)                         # (N, H, W, 9*Cin)
    # One zero patch-row above/below so every tile can fetch its conv2 halo.
    patches = jnp.pad(patches, ((0, 0), (1, 1), (0, 0), (0, 0)))     # (N, H+2, W, 9*Cin)
    rows = jnp.arange(n_tiles)[:, None] * tile_h + jnp.arange(ext)[None, :]
    tiles = patches[:, rows]                                         # (N, T, EXT, W, 9*Cin)
    return tiles.reshape(n, n_tiles, ext * w, 9 * cin).astype(jnp.bfloat16)


# ---------------------------------------------------------------------------
# Wrapper: NCHW in / NCHW out, matching UNetEncoder.forward -> (y_enc, y_pool)
# ---------------------------------------------------------------------------
def unet_encoder_forward(params, x_nchw, has_max_pool=True, tile_h=8):
    w1, b1, w2, b2 = params["w1"], params["b1"], params["w2"], params["b2"]
    n, cin, h, w = x_nchw.shape
    cout = w1.shape[0]
    assert h % 2 == 0 and w % 2 == 0, "2x2/stride-2 pool expects even H, W"
    assert w % 8 == 0, "kernel keeps W on the sublane axis; needs W % 8 == 0"
    tile_h = min(tile_h, h)
    assert h % tile_h == 0 and tile_h % 2 == 0, "row tile must divide H, be even"
    n_tiles = h // tile_h
    ext = tile_h + 2

    x_tiles = _im2col_tiles(x_nchw, tile_h)

    # PyTorch (Cout, Cin, 3, 3) -> folded matmul layouts; bf16 for the MXU.
    w1m = jnp.transpose(w1, (2, 3, 1, 0)).reshape(9 * cin, cout).astype(jnp.bfloat16)
    w2m = jnp.transpose(w2, (2, 3, 1, 0)).reshape(3, 3 * cout, cout).astype(jnp.bfloat16)
    b1r = b1.reshape(1, cout).astype(jnp.float32)
    b2r = b2.reshape(1, cout).astype(jnp.float32)

    kernel = functools.partial(_encoder_block_kernel, TH=tile_h, W=w, C=cout,
                               has_max_pool=has_max_pool)

    out_shape = [jax.ShapeDtypeStruct((n, h, w, cout), jnp.float32)]
    out_specs = [pl.BlockSpec((None, tile_h, w, cout), lambda i, t: (i, t, 0, 0))]
    scratch = [
        pltpu.VMEM((ext, 2 * _PAD + w, cout), jnp.float32),   # W-padded conv1 staging
        pltpu.VMEM((ext * w, 3 * cout), jnp.bfloat16),        # dx-folded conv2 operand
    ]
    if has_max_pool:
        out_shape.append(jax.ShapeDtypeStruct((n, h // 2, w // 2, cout), jnp.float32))
        out_specs.append(pl.BlockSpec((None, tile_h // 2, w // 2, cout),
                                      lambda i, t: (i, t, 0, 0)))
        scratch.append(pltpu.VMEM((tile_h // 2, w, cout), jnp.float32))  # row-max temp

    outs = pl.pallas_call(
        kernel,
        out_shape=out_shape,
        grid=(n, n_tiles),
        in_specs=[
            pl.BlockSpec((None, None, ext * w, 9 * cin), lambda i, t: (i, t, 0, 0)),
            pl.BlockSpec((9 * cin, cout), lambda i, t: (0, 0)),           # resident
            pl.BlockSpec((1, cout), lambda i, t: (0, 0)),
            pl.BlockSpec((3, 3 * cout, cout), lambda i, t: (0, 0, 0)),    # resident
            pl.BlockSpec((1, cout), lambda i, t: (0, 0)),
        ],
        out_specs=out_specs,
        scratch_shapes=scratch,
        compiler_params=pltpu.CompilerParams(
            dimension_semantics=("parallel", "parallel")),   # batch x row-tiles
    )(x_tiles, w1m, b1r, w2m, b2r)

    y_enc = jnp.transpose(outs[0], (0, 3, 1, 2))                  # NHWC -> NCHW
    y_pool = jnp.transpose(outs[1], (0, 3, 1, 2)) if has_max_pool else y_enc
    return y_enc, y_pool


# ---------------------------------------------------------------------------
# Parameter init (PyTorch Conv2d default: U(+-1/sqrt(fan_in)))
# ---------------------------------------------------------------------------
def _init_conv(key, cout, cin, kh, kw):
    k1, k2 = jax.random.split(key)
    scale = 1.0 / (cin * kh * kw) ** 0.5
    w = jax.random.uniform(k1, (cout, cin, kh, kw), jnp.float32, -scale, scale)
    b = jax.random.uniform(k2, (cout,), jnp.float32, -scale, scale)
    return w, b


def init_encoder_params(key, in_channels, out_channels):
    k1, k2 = jax.random.split(key)
    w1, b1 = _init_conv(k1, out_channels, in_channels, 3, 3)
    w2, b2 = _init_conv(k2, out_channels, out_channels, 3, 3)
    return {"w1": w1, "b1": b1, "w2": w2, "b2": b2}


# ---------------------------------------------------------------------------
# Pure-JAX reference for a correctness check (f32 throughout)
# ---------------------------------------------------------------------------
def _reference_forward(params, x_nchw, has_max_pool=True):
    x = jnp.transpose(x_nchw, (0, 2, 3, 1))

    def conv(z, w_pt, b):
        w_hwio = jnp.transpose(w_pt, (2, 3, 1, 0))
        y = jax.lax.conv_general_dilated(
            z, w_hwio, window_strides=(1, 1), padding="SAME",
            dimension_numbers=("NHWC", "HWIO", "NHWC"))
        return jnp.maximum(y + b, 0.0)

    y_enc = conv(conv(x, params["w1"], params["b1"]), params["w2"], params["b2"])
    y_pool = y_enc
    if has_max_pool:
        y_pool = jax.lax.reduce_window(y_enc, -jnp.inf, jax.lax.max,
                                       (1, 2, 2, 1), (1, 2, 2, 1), "VALID")
    return (jnp.transpose(y_enc, (0, 3, 1, 2)),
            jnp.transpose(y_pool, (0, 3, 1, 2)))


# ---------------------------------------------------------------------------
if __name__ == "__main__":
    key = jax.random.PRNGKey(0)
    k_param, k_input = jax.random.split(key)

    in_channels, out_channels = 3, 64          # first UNet encoder stage
    params = init_encoder_params(k_param, in_channels, out_channels)
    x = jax.random.normal(k_input, (2, in_channels, 16, 16), dtype=jnp.float32)

    fwd = jax.jit(functools.partial(unet_encoder_forward, has_max_pool=True))
    y_enc, y_pool = fwd(params, x)
    jax.block_until_ready((y_enc, y_pool))

    assert y_enc.shape == (2, out_channels, 16, 16), y_enc.shape
    assert y_pool.shape == (2, out_channels, 8, 8), y_pool.shape

    # Loose tolerance: both convs feed the MXU bf16 operands (f32 accumulate),
    # so a ~1e-2 deviation from the f32 reference is expected and intended.
    ref_enc, ref_pool = _reference_forward(params, x, has_max_pool=True)
    assert float(jnp.max(jnp.abs(y_enc - ref_enc))) < 5e-2
    assert float(jnp.max(jnp.abs(y_pool - ref_pool))) < 5e-2

    print("KERNEL_OK")
</pallas_src>

<mosaic_0001>
module attributes {stable_mosaic.version = 11 : i64} {
  func.func @_encoder_block_kernel(%arg0: i32, %arg1: i32, %arg2: memref<1x1x160x27xbf16, #tpu.memory_space<vmem>>, %arg3: memref<27x64xbf16, #tpu.memory_space<vmem>>, %arg4: memref<1x64xf32, #tpu.memory_space<vmem>>, %arg5: memref<3x192x64xbf16, #tpu.memory_space<vmem>>, %arg6: memref<1x64xf32, #tpu.memory_space<vmem>>, %arg7: memref<1x8x16x64xf32, #tpu.memory_space<vmem>>, %arg8: memref<1x4x8x64xf32, #tpu.memory_space<vmem>>, %arg9: memref<10x32x64xf32, #tpu.memory_space<vmem>>, %arg10: memref<160x192xbf16, #tpu.memory_space<vmem>>, %arg11: memref<4x16x64xf32, #tpu.memory_space<vmem>>) attributes {dimension_semantics = [#tpu.dimension_semantics<parallel>, #tpu.dimension_semantics<parallel>], iteration_bounds = array<i64: 2, 2>, scalar_prefetch = 0 : i64, scratch_operands = 3 : i64, tpu.core_type = #tpu.core_type<tc>, window_params = [{transform_indices = @transform_0, window_bounds = array<i64: 1, 1, 160, 27>}, {pipeline_mode = #tpu.pipeline_mode<synchronous>, transform_indices = @transform_1, window_bounds = array<i64: 27, 64>}, {pipeline_mode = #tpu.pipeline_mode<synchronous>, transform_indices = @transform_2, window_bounds = array<i64: 1, 64>}, {pipeline_mode = #tpu.pipeline_mode<synchronous>, transform_indices = @transform_3, window_bounds = array<i64: 3, 192, 64>}, {pipeline_mode = #tpu.pipeline_mode<synchronous>, transform_indices = @transform_4, window_bounds = array<i64: 1, 64>}, {transform_indices = @transform_5, window_bounds = array<i64: 1, 8, 16, 64>}, {transform_indices = @transform_6, window_bounds = array<i64: 1, 4, 8, 64>}]} {
    %c0 = arith.constant 0 : index
    %c0_0 = arith.constant 0 : index
    %c0_1 = arith.constant 0 : index
    %c0_2 = arith.constant 0 : index
    %0 = vector.load %arg2[%c0, %c0_0, %c0_1, %c0_2] : memref<1x1x160x27xbf16, #tpu.memory_space<vmem>>, vector<1x1x160x27xbf16>
    %1 = vector.shape_cast %0 : vector<1x1x160x27xbf16> to vector<160x27xbf16>
    %c0_3 = arith.constant 0 : index
    %c0_4 = arith.constant 0 : index
    %2 = vector.load %arg3[%c0_3, %c0_4] : memref<27x64xbf16, #tpu.memory_space<vmem>>, vector<27x64xbf16>
    %cst = arith.constant dense<0.000000e+00> : vector<160x64xf32>
    %3 = tpu.matmul %1, %2, %cst {dimension_numbers = #tpu.dot_dimension_numbers<[1], [0], [0], [1], [0, 0, 1, 1], [], []>} : vector<160x27xbf16>, vector<27x64xbf16>, vector<160x64xf32> -> vector<160x64xf32>
    %c0_5 = arith.constant 0 : index
    %c0_6 = arith.constant 0 : index
    %4 = vector.load %arg4[%c0_5, %c0_6] : memref<1x64xf32, #tpu.memory_space<vmem>>, vector<1x64xf32>
    %5 = vector.broadcast %4 : vector<1x64xf32> to vector<160x64xf32>
    %6 = arith.addf %3, %5 : vector<160x64xf32>
    %cst_7 = arith.constant 0.000000e+00 : f32
    %7 = vector.broadcast %cst_7 : f32 to vector<160x64xf32>
    %8 = arith.maximumf %6, %7 : vector<160x64xf32>
    %9 = vector.shape_cast %8 : vector<160x64xf32> to vector<10x16x64xf32>
    %c0_8 = arith.constant 0 : index
    %c8 = arith.constant 8 : index
    %c0_9 = arith.constant 0 : index
    %10 = vector.load %arg9[%c0_8, %c8, %c0_9] : memref<10x32x64xf32, #tpu.memory_space<vmem>>, vector<10x16x64xf32>
    tpu.vector_store %arg9[%c0_8, %c8, %c0_9], %9 {strides = array<i32>} : memref<10x32x64xf32, #tpu.memory_space<vmem>>, vector<10x16x64xf32>,
    %cst_10 = arith.constant 0.000000e+00 : f32
    %11 = vector.broadcast %cst_10 : f32 to vector<10x8x64xf32>
    %c0_11 = arith.constant 0 : index
    %c0_12 = arith.constant 0 : index
    %c0_13 = arith.constant 0 : index
    %12 = vector.load %arg9[%c0_11, %c0_12, %c0_13] : memref<10x32x64xf32, #tpu.memory_space<vmem>>, vector<10x8x64xf32>
    tpu.vector_store %arg9[%c0_11, %c0_12, %c0_13], %11 {strides = array<i32>} : memref<10x32x64xf32, #tpu.memory_space<vmem>>, vector<10x8x64xf32>,
    %c0_14 = arith.constant 0 : index
    %c24 = arith.constant 24 : index
    %c0_15 = arith.constant 0 : index
    %13 = vector.load %arg9[%c0_14, %c24, %c0_15] : memref<10x32x64xf32, #tpu.memory_space<vmem>>, vector<10x8x64xf32>
    tpu.vector_store %arg9[%c0_14, %c24, %c0_15], %11 {strides = array<i32>} : memref<10x32x64xf32, #tpu.memory_space<vmem>>, vector<10x8x64xf32>,
    %cst_16 = arith.constant 0.000000e+00 : f32
    %14 = vector.broadcast %cst_16 : f32 to vector<1x32x64xf32>
    %c0_i32 = arith.constant 0 : i32
    %15 = arith.cmpi eq, %arg1, %c0_i32 : i32
    %16 = arith.extui %15 : i1 to i32
    %c0_i32_17 = arith.constant 0 : i32
    %17 = arith.cmpi ne, %16, %c0_i32_17 : i32
    scf.if %17 {
      %c0_62 = arith.constant 0 : index
      %c0_63 = arith.constant 0 : index
      %c0_64 = arith.constant 0 : index
      %66 = vector.load %arg9[%c0_62, %c0_63, %c0_64] : memref<10x32x64xf32, #tpu.memory_space<vmem>>, vector<1x32x64xf32>
      tpu.vector_store %arg9[%c0_62, %c0_63, %c0_64], %14 {strides = array<i32>} : memref<10x32x64xf32, #tpu.memory_space<vmem>>, vector<1x32x64xf32>,
    } else {
    }
    %c1_i32 = arith.constant 1 : i32
    %18 = arith.cmpi eq, %arg1, %c1_i32 : i32
    %19 = arith.extui %18 : i1 to i32
    %c0_i32_18 = arith.constant 0 : i32
    %20 = arith.cmpi ne, %19, %c0_i32_18 : i32
    scf.if %20 {
      %c9_62 = arith.constant 9 : index
      %c0_63 = arith.constant 0 : index
      %c0_64 = arith.constant 0 : index
      %66 = vector.load %arg9[%c9_62, %c0_63, %c0_64] : memref<10x32x64xf32, #tpu.memory_space<vmem>>, vector<1x32x64xf32>
      tpu.vector_store %arg9[%c9_62, %c0_63, %c0_64], %14 {strides = array<i32>} : memref<10x32x64xf32, #tpu.memory_space<vmem>>, vector<1x32x64xf32>,
    } else {
    }
    %c0_19 = arith.constant 0 : index
    %c7 = arith.constant 7 : index
    %c0_20 = arith.constant 0 : index
    %21 = vector.load %arg9[%c0_19, %c7, %c0_20] : memref<10x32x64xf32, #tpu.memory_space<vmem>>, vector<10x16x64xf32>
    %22 = vector.shape_cast %21 : vector<10x16x64xf32> to vector<160x64xf32>
    %23 = arith.truncf %22 : vector<160x64xf32> to vector<160x64xbf16>
    %c0_21 = arith.constant 0 : index
    %c8_22 = arith.constant 8 : index
    %c0_23 = arith.constant 0 : index
    %24 = vector.load %arg9[%c0_21, %c8_22, %c0_23] : memref<10x32x64xf32, #tpu.memory_space<vmem>>, vector<10x16x64xf32>
    %25 = vector.shape_cast %24 : vector<10x16x64xf32> to vector<160x64xf32>
    %26 = arith.truncf %25 : vector<160x64xf32> to vector<160x64xbf16>
    %c0_24 = arith.constant 0 : index
    %c9 = arith.constant 9 : index
    %c0_25 = arith.constant 0 : index
    %27 = vector.load %arg9[%c0_24, %c9, %c0_25] : memref<10x32x64xf32, #tpu.memory_space<vmem>>, vector<10x16x64xf32>
    %28 = vector.shape_cast %27 : vector<10x16x64xf32> to vector<160x64xf32>
    %29 = arith.truncf %28 : vector<160x64xf32> to vector<160x64xbf16>
    %30 = tpu.concatenate %23, %26, %29 in 1 : vector<160x64xbf16>, vector<160x64xbf16>, vector<160x64xbf16> -> vector<160x192xbf16>
    %c0_26 = arith.constant 0 : index
    %c0_27 = arith.constant 0 : index
    %31 = vector.load %arg10[%c0_26, %c0_27] : memref<160x192xbf16, #tpu.memory_space<vmem>>, vector<160x192xbf16>
    tpu.vector_store %arg10[%c0_26, %c0_27], %30 {strides = array<i32>} : memref<160x192xbf16, #tpu.memory_space<vmem>>, vector<160x192xbf16>,
    %c0_28 = arith.constant 0 : index
    %c0_29 = arith.constant 0 : index
    %32 = vector.load %arg10[%c0_28, %c0_29] : memref<160x192xbf16, #tpu.memory_space<vmem>>, vector<128x192xbf16>
    %c0_30 = arith.constant 0 : index
    %c0_31 = arith.constant 0 : index
    %c0_32 = arith.constant 0 : index
    %33 = vector.load %arg5[%c0_30, %c0_31, %c0_32] : memref<3x192x64xbf16, #tpu.memory_space<vmem>>, vector<1x192x64xbf16>
    %34 = vector.shape_cast %33 : vector<1x192x64xbf16> to vector<192x64xbf16>
    %cst_33 = arith.constant dense<0.000000e+00> : vector<128x64xf32>
    %35 = tpu.matmul %32, %34, %cst_33 {dimension_numbers = #tpu.dot_dimension_numbers<[1], [0], [0], [1], [0, 0, 1, 1], [], []>} : vector<128x192xbf16>, vector<192x64xbf16>, vector<128x64xf32> -> vector<128x64xf32>
    %c16 = arith.constant 16 : index
    %c0_34 = arith.constant 0 : index
    %36 = vector.load %arg10[%c16, %c0_34] : memref<160x192xbf16, #tpu.memory_space<vmem>>, vector<128x192xbf16>
    %c1 = arith.constant 1 : index
    %c0_35 = arith.constant 0 : index
    %c0_36 = arith.constant 0 : index
    %37 = vector.load %arg5[%c1, %c0_35, %c0_36] : memref<3x192x64xbf16, #tpu.memory_space<vmem>>, vector<1x192x64xbf16>
    %38 = vector.shape_cast %37 : vector<1x192x64xbf16> to vector<192x64xbf16>
    %cst_37 = arith.constant dense<0.000000e+00> : vector<128x64xf32>
    %39 = tpu.matmul %36, %38, %cst_37 {dimension_numbers = #tpu.dot_dimension_numbers<[1], [0], [0], [1], [0, 0, 1, 1], [], []>} : vector<128x192xbf16>, vector<192x64xbf16>, vector<128x64xf32> -> vector<128x64xf32>
    %40 = arith.addf %35, %39 : vector<128x64xf32>
    %c32 = arith.constant 32 : index
    %c0_38 = arith.constant 0 : index
    %41 = vector.load %arg10[%c32, %c0_38] : memref<160x192xbf16, #tpu.memory_space<vmem>>, vector<128x192xbf16>
    %c2 = arith.constant 2 : index
    %c0_39 = arith.constant 0 : index
    %c0_40 = arith.constant 0 : index
    %42 = vector.load %arg5[%c2, %c0_39, %c0_40] : memref<3x192x64xbf16, #tpu.memory_space<vmem>>, vector<1x192x64xbf16>
    %43 = vector.shape_cast %42 : vector<1x192x64xbf16> to vector<192x64xbf16>
    %cst_41 = arith.constant dense<0.000000e+00> : vector<128x64xf32>
    %44 = tpu.matmul %41, %43, %cst_41 {dimension_numbers = #tpu.dot_dimension_numbers<[1], [0], [0], [1], [0, 0, 1, 1], [], []>} : vector<128x192xbf16>, vector<192x64xbf16>, vector<128x64xf32> -> vector<128x64xf32>
    %45 = arith.addf %40, %44 : vector<128x64xf32>
    %c0_42 = arith.constant 0 : index
    %c0_43 = arith.constant 0 : index
    %46 = vector.load %arg6[%c0_42, %c0_43] : memref<1x64xf32, #tpu.memory_space<vmem>>, vector<1x64xf32>
    %47 = vector.broadcast %46 : vector<1x64xf32> to vector<128x64xf32>
    %48 = arith.addf %45, %47 : vector<128x64xf32>
    %cst_44 = arith.constant 0.000000e+00 : f32
    %49 = vector.broadcast %cst_44 : f32 to vector<128x64xf32>
    %50 = arith.maximumf %48, %49 : vector<128x64xf32>
    %51 = vector.shape_cast %50 : vector<128x64xf32> to vector<8x16x64xf32>
    %c0_45 = arith.constant 0 : index
    %c0_46 = arith.constant 0 : index
    %c0_47 = arith.constant 0 : index
    %c0_48 = arith.constant 0 : index
    %52 = vector.load %arg7[%c0_45, %c0_46, %c0_47, %c0_48] : memref<1x8x16x64xf32, #tpu.memory_space<vmem>>, vector<1x8x16x64xf32>
    %53 = vector.shape_cast %52 : vector<1x8x16x64xf32> to vector<8x16x64xf32>
    %54 = vector.shape_cast %51 : vector<8x16x64xf32> to vector<1x8x16x64xf32>
    tpu.vector_store %arg7[%c0_45, %c0_46, %c0_47, %c0_48], %54 {strides = array<i32>} : memref<1x8x16x64xf32, #tpu.memory_space<vmem>>, vector<1x8x16x64xf32>,
    %55 = vector.shape_cast %50 : vector<128x64xf32> to vector<4x32x64xf32>
    %56 = vector.extract_strided_slice %55 {offsets = [0, 0, 0], sizes = [4, 16, 64], strides = [1, 1, 1]} : vector<4x32x64xf32> to vector<4x16x64xf32>
    %57 = vector.extract_strided_slice %55 {offsets = [0, 16, 0], sizes = [4, 16, 64], strides = [1, 1, 1]} : vector<4x32x64xf32> to vector<4x16x64xf32>
    %58 = arith.maximumf %56, %57 : vector<4x16x64xf32>
    %c0_49 = arith.constant 0 : index
    %c0_50 = arith.constant 0 : index
    %c0_51 = arith.constant 0 : index
    %59 = vector.load %arg11[%c0_49, %c0_50, %c0_51] : memref<4x16x64xf32, #tpu.memory_space<vmem>>, vector<4x16x64xf32>
    tpu.vector_store %arg11[%c0_49, %c0_50, %c0_51], %58 {strides = array<i32>} : memref<4x16x64xf32, #tpu.memory_space<vmem>>, vector<4x16x64xf32>,
    %c0_52 = arith.constant 0 : index
    %c0_53 = arith.constant 0 : index
    %c0_54 = arith.constant 0 : index
    %60 = tpu.strided_load %arg11[%c0_52, %c0_53, %c0_54] {strides = array<i32: 1, 2, 1>} : memref<4x16x64xf32, #tpu.memory_space<vmem>>, vector<4x8x64xf32>
    %c0_55 = arith.constant 0 : index
    %c1_56 = arith.constant 1 : index
    %c0_57 = arith.constant 0 : index
    %61 = tpu.strided_load %arg11[%c0_55, %c1_56, %c0_57] {strides = array<i32: 1, 2, 1>} : memref<4x16x64xf32, #tpu.memory_space<vmem>>, vector<4x8x64xf32>
    %62 = arith.maximumf %60, %61 : vector<4x8x64xf32>
    %c0_58 = arith.constant 0 : index
    %c0_59 = arith.constant 0 : index
    %c0_60 = arith.constant 0 : index
    %c0_61 = arith.constant 0 : index
    %63 = vector.load %arg8[%c0_58, %c0_59, %c0_60, %c0_61] : memref<1x4x8x64xf32, #tpu.memory_space<vmem>>, vector<1x4x8x64xf32>
    %64 = vector.shape_cast %63 : vector<1x4x8x64xf32> to vector<4x8x64xf32>
    %65 = vector.shape_cast %62 : vector<4x8x64xf32> to vector<1x4x8x64xf32>
    tpu.vector_store %arg8[%c0_58, %c0_59, %c0_60, %c0_61], %65 {strides = array<i32>} : memref<1x4x8x64xf32, #tpu.memory_space<vmem>>, vector<1x4x8x64xf32>,
    return
  }
  func.func @transform_0(%arg0: i32, %arg1: i32) -> (i32, i32, i32, i32) {
    %c0_i32 = arith.constant 0 : i32
    %c0_i32_0 = arith.constant 0 : i32
    %c0_i32_1 = arith.constant 0 : i32
    return %arg0, %arg1, %c0_i32, %c0_i32_0 : i32, i32, i32, i32
  }
  func.func @transform_1(%arg0: i32, %arg1: i32) -> (i32, i32) {
    %c0_i32 = arith.constant 0 : i32
    %c0_i32_0 = arith.constant 0 : i32
    %c0_i32_1 = arith.constant 0 : i32
    return %c0_i32, %c0_i32_0 : i32, i32
  }
  func.func @transform_2(%arg0: i32, %arg1: i32) -> (i32, i32) {
    %c0_i32 = arith.constant 0 : i32
    %c0_i32_0 = arith.constant 0 : i32
    %c0_i32_1 = arith.constant 0 : i32
    return %c0_i32, %c0_i32_0 : i32, i32
  }
  func.func @transform_3(%arg0: i32, %arg1: i32) -> (i32, i32, i32) {
    %c0_i32 = arith.constant 0 : i32
    %c0_i32_0 = arith.constant 0 : i32
    %c0_i32_1 = arith.constant 0 : i32
    %c0_i32_2 = arith.constant 0 : i32
    return %c0_i32, %c0_i32_0, %c0_i32_1 : i32, i32, i32
  }
  func.func @transform_4(%arg0: i32, %arg1: i32) -> (i32, i32) {
    %c0_i32 = arith.constant 0 : i32
    %c0_i32_0 = arith.constant 0 : i32
    %c0_i32_1 = arith.constant 0 : i32
    return %c0_i32, %c0_i32_0 : i32, i32
  }
  func.func @transform_5(%arg0: i32, %arg1: i32) -> (i32, i32, i32, i32) {
    %c0_i32 = arith.constant 0 : i32
    %c0_i32_0 = arith.constant 0 : i32
    %c0_i32_1 = arith.constant 0 : i32
    return %arg0, %arg1, %c0_i32, %c0_i32_0 : i32, i32, i32, i32
  }
  func.func @transform_6(%arg0: i32, %arg1: i32) -> (i32, i32, i32, i32) {
    %c0_i32 = arith.constant 0 : i32
    %c0_i32_0 = arith.constant 0 : i32
    %c0_i32_1 = arith.constant 0 : i32
    return %arg0, %arg1, %c0_i32, %c0_i32_0 : i32, i32, i32, i32
  }
}

</mosaic_0001>

<llo_original>
// kernel: unet_encoder_forward.1
$region0: #{unet_encoder_forward.1}
  #allocation0 [shape = 'u32[]', space=smem, size = 0x4, offset = 0x4, fixed_abs, tag = 'smem constant byte address 0x4 - core index']
  #allocation1 [shape = 'u32[72,128]{1,0:T(1,128)}', space=vmem, size = 0x9000, scoped, tag = 'internal scratch']
  #allocation2 [shape = 'f32[10,32,64]{2,1,0:T(8,128)}', space=vmem, size = 0x28000, scoped, tag = 'scratch operand']
  #allocation3 [shape = 'bf16[160,192]{1,0:T(8,128)(2,1)}', space=vmem, size = 0x14000, scoped, tag = 'scratch operand']
  #allocation4 [shape = 'f32[4,16,64]{2,1,0:T(8,128)}', space=vmem, size = 0x8000, scoped, tag = 'scratch operand']
  %s0 = inlined_call_operand.vmem [shape: bf16[2,2,160,27], index: 0, kind: input, shape index: {}]
  %s1 = inlined_call_operand.vmem [shape: bf16[27,64], index: 1, kind: input, shape index: {}]
  %s2 = inlined_call_operand.vmem [shape: f32[1,64], index: 2, kind: input, shape index: {}]
  %s3 = inlined_call_operand.vmem [shape: bf16[3,192,64], index: 3, kind: input, shape index: {}]
  %s4 = inlined_call_operand.vmem [shape: f32[1,64], index: 4, kind: input, shape index: {}]
  %s5 = inlined_call_operand.hbm [shape: f32[2,16,16,64], index: 5, kind: output, shape index: {0}]
  %s6 = inlined_call_operand.hbm [shape: f32[2,8,8,64], index: 6, kind: output, shape index: {1}]
  %7 = xla_tuple %s5, %s6
  %s8 = sld [smem:[#allocation0]]
  $region69: #{unet_encoder_forward.1} parent=0
    _
  %s10 = ssub.s32 1, %s8
  %s11 = scalar_select 0, %s10, %s8
  $region1: #{unet_encoder_forward.1} parent=0
    #allocation5 [shape = 'u8[131072]{0}', space=vmem, size = 0x20000, scoped, tag = 'output window, operand 0']
    #allocation6 [shape = 's32[2]{0}', space=sflag, size = 0x8, scoped, tag = 'scoped memory for unet_encoder_forward.1']
    #allocation7 [shape = 'u8[32768]{0}', space=vmem, size = 0x8000, scoped, tag = 'output window, operand 1']
    #allocation8 [shape = 's32[2]{0}', space=sflag, size = 0x8, scoped, tag = 'scoped memory for unet_encoder_forward.1']
    %12 = vsyncpa [#allocation6], 0
    %s13 = scalar_lea.sflag [#allocation6], 1
    %14 = vsyncpa %s13, 0
    %15 = vsyncpa [#allocation8], 0
    %s16 = scalar_lea.sflag [#allocation8], 1
    %17 = vsyncpa %s16, 0
    loop: start=0, step=1, limit=6
    $region2: #{unet_encoder_forward.1} parent=1 // loop_pre_header
      _
    $region3: #{unet_encoder_forward.1} parent=1 // loop_header
      %s19 = sphi 0, %s23
      %p20 = scmp.ge.s32.totalorder %s19, 6
      %s26 = sphi 0, %s38
      %s27 = sphi 0, %s34
      %s28 = sphi 0, %s26
      %s29 = sphi 0, %s27
      %s30 = sphi 0, %s28
      %s31 = sphi 0, %s29
      %s43 = sphi 0, %s45
      %s46 = sphi 0, %s43
      %s47 = sphi 0, %s46
      %s63 = sphi 0, %s47
      %s67 = sphi 0, %s67
      %s69 = sphi 0, %s67
      %s70 = sphi 0, %s69
      %s84 = sphi 0, %s70
      %s88 = sphi 0, %s88
      %s90 = sphi 0, %s88
      %s91 = sphi 0, %s90
      %s105 = sphi 0, %s91
      %s109 = sphi 0, %s109
      %s111 = sphi 0, %s109
      %s112 = sphi 0, %s111
      %s126 = sphi 0, %s112
      %s130 = sphi 0, %s130
      %s132 = sphi 0, %s130
      %s133 = sphi 0, %s132
      %s147 = sphi 0, %s133
      %s155 = sphi 0, %s157
      %s158 = sphi 0, %s155
      %s159 = sphi 0, %s158
      %s175 = sphi 0, %s159
      %s183 = sphi 0, %s185
      %s186 = sphi 0, %s183
      %s187 = sphi 0, %s186
      %s203 = sphi 0, %s187
    $region4: #{unet_encoder_forward.1} parent=1 // loop_header_branch
      %22 = sbr.rel (%p20) target = $region8
    $region5: #{unet_encoder_forward.1} parent=1 // loop_body
      %s24 = ssub.s32 %s19, 1
      %s25 = ssub.s32 %s19, 2
      %s32 = sadd.s32 1, %s27
      %p33 = scmp.ge.s32.totalorder %s32, 2
      %s34 = scalar_select %p33, 0, %s32
      %s35 = sadd.s32 1, %s26
      %s36 = scalar_select %p33, %s35, %s26
      %p37 = scmp.ge.s32.totalorder %s36, 2
      %s38 = scalar_select %p37, 0, %s36
      %s39 = ssub.s32 %s26, %s38
      %s40 = ssub.s32 %s27, %s34
      %s41 = sor.u32 %s39, %s40
      %p42 = scmp.eq.s32.totalorder %s41, 0
      %s44 = sadd.s32 %s43, 1
      %s45 = scalar_select %p42, %s43, %s44
      %p48 = pneg %p42
      %p49 = scmp.eq.s32.totalorder %s19, 3
      %p50 = por %p48, %p49
      %p51 = scmp.ne.s32.totalorder %s43, %s46
      %p52 = scmp.eq.s32.totalorder %s19, 0
      %p53 = por %p51, %p52
      %p54 = scmp.ne.s32.totalorder %s43, %s46
      %p55 = scmp.eq.s32.totalorder %s24, 3
      %p56 = por %p54, %p55
      %p57 = scmp.ne.s32.totalorder %s46, %s47
      %p58 = scmp.eq.s32.totalorder %s24, 0
      %p59 = por %p57, %p58
      %p60 = scmp.ne.s32.totalorder %s46, %s47
      %p61 = scmp.eq.s32.totalorder %s25, 3
      %p62 = por %p60, %p61
      %p64 = scmp.ne.s32.totalorder %s47, %s63
      %p65 = scmp.eq.s32.totalorder %s25, 0
      %p66 = por %p64, %p65
      %s68 = sadd.s32 %s67, 1
      %p71 = scmp.eq.s32.totalorder %s19, 3
      %p72 = scmp.ne.s32.totalorder %s67, %s69
      %p73 = scmp.eq.s32.totalorder %s19, 0
      %p74 = por %p72, %p73
      %p75 = scmp.ne.s32.totalorder %s67, %s69
      %p76 = scmp.eq.s32.totalorder %s24, 3
      %p77 = por %p75, %p76
      %p78 = scmp.ne.s32.totalorder %s69, %s70
      %p79 = scmp.eq.s32.totalorder %s24, 0
      %p80 = por %p78, %p79
      %p81 = scmp.ne.s32.totalorder %s69, %s70
      %p82 = scmp.eq.s32.totalorder %s25, 3
      %p83 = por %p81, %p82
      %p85 = scmp.ne.s32.totalorder %s70, %s84
      %p86 = scmp.eq.s32.totalorder %s25, 0
      %p87 = por %p85, %p86
      %s89 = sadd.s32 %s88, 1
      %p92 = scmp.eq.s32.totalorder %s19, 3
      %p93 = scmp.ne.s32.totalorder %s88, %s90
      %p94 = scmp.eq.s32.totalorder %s19, 0
      %p95 = por %p93, %p94
      %p96 = scmp.ne.s32.totalorder %s88, %s90
      %p97 = scmp.eq.s32.totalorder %s24, 3
      %p98 = por %p96, %p97
      %p99 = scmp.ne.s32.totalorder %s90, %s91
      %p100 = scmp.eq.s32.totalorder %s24, 0
      %p101 = por %p99, %p100
      %p102 = scmp.ne.s32.totalorder %s90, %s91
      %p103 = scmp.eq.s32.totalorder %s25, 3
      %p104 = por %p102, %p103
      %p106 = scmp.ne.s32.totalorder %s91, %s105
      %p107 = scmp.eq.s32.totalorder %s25, 0
      %p108 = por %p106, %p107
      %s110 = sadd.s32 %s109, 1
      %p113 = scmp.eq.s32.totalorder %s19, 3
      %p114 = scmp.ne.s32.totalorder %s109, %s111
      %p115 = scmp.eq.s32.totalorder %s19, 0
      %p116 = por %p114, %p115
      %p117 = scmp.ne.s32.totalorder %s109, %s111
      %p118 = scmp.eq.s32.totalorder %s24, 3
      %p119 = por %p117, %p118
      %p120 = scmp.ne.s32.totalorder %s111, %s112
      %p121 = scmp.eq.s32.totalorder %s24, 0
      %p122 = por %p120, %p121
      %p123 = scmp.ne.s32.totalorder %s111, %s112
      %p124 = scmp.eq.s32.totalorder %s25, 3
      %p125 = por %p123, %p124
      %p127 = scmp.ne.s32.totalorder %s112, %s126
      %p128 = scmp.eq.s32.totalorder %s25, 0
      %p129 = por %p127, %p128
      %s131 = sadd.s32 %s130, 1
      %p134 = scmp.eq.s32.totalorder %s19, 3
      %p135 = scmp.ne.s32.totalorder %s130, %s132
      %p136 = scmp.eq.s32.totalorder %s19, 0
      %p137 = por %p135, %p136
      %p138 = scmp.ne.s32.totalorder %s130, %s132
      %p139 = scmp.eq.s32.totalorder %s24, 3
      %p140 = por %p138, %p139
      %p141 = scmp.ne.s32.totalorder %s132, %s133
      %p142 = scmp.eq.s32.totalorder %s24, 0
      %p143 = por %p141, %p142
      %p144 = scmp.ne.s32.totalorder %s132, %s133
      %p145 = scmp.eq.s32.totalorder %s25, 3
      %p146 = por %p144, %p145
      %p148 = scmp.ne.s32.totalorder %s133, %s147
      %p149 = scmp.eq.s32.totalorder %s25, 0
      %p150 = por %p148, %p149
      %s151 = ssub.s32 %s26, %s38
      %s152 = ssub.s32 %s27, %s34
      %s153 = sor.u32 %s151, %s152
      %p154 = scmp.eq.s32.totalorder %s153, 0
      %s156 = sadd.s32 %s155, 1
      %s157 = scalar_select %p154, %s155, %s156
      %p160 = pneg %p154
      %p161 = scmp.eq.s32.totalorder %s19, 3
      %p162 = por %p160, %p161
      %p163 = scmp.ne.s32.totalorder %s155, %s158
      %p164 = scmp.eq.s32.totalorder %s19, 0
      %p165 = por %p163, %p164
      %p166 = scmp.ne.s32.totalorder %s155, %s158
      %p167 = scmp.eq.s32.totalorder %s24, 3
      %p168 = por %p166, %p167
      %p169 = scmp.ne.s32.totalorder %s158, %s159
      %p170 = scmp.eq.s32.totalorder %s24, 0
      %p171 = por %p169, %p170
      %p172 = scmp.ne.s32.totalorder %s158, %s159
      %p173 = scmp.eq.s32.totalorder %s25, 3
      %p174 = por %p172, %p173
      %p176 = scmp.ne.s32.totalorder %s159, %s175
      %p177 = scmp.eq.s32.totalorder %s25, 0
      %p178 = por %p176, %p177
      %s179 = ssub.s32 %s26, %s38
      %s180 = ssub.s32 %s27, %s34
      %s181 = sor.u32 %s179, %s180
      %p182 = scmp.eq.s32.totalorder %s181, 0
      %s184 = sadd.s32 %s183, 1
      %s185 = scalar_select %p182, %s183, %s184
      %p188 = pneg %p182
      %p189 = scmp.eq.s32.totalorder %s19, 3
      %p190 = por %p188, %p189
      %p191 = scmp.ne.s32.totalorder %s183, %s186
      %p192 = scmp.eq.s32.totalorder %s19, 0
      %p193 = por %p191, %p192
      %p194 = scmp.ne.s32.totalorder %s183, %s186
      %p195 = scmp.eq.s32.totalorder %s24, 3
      %p196 = por %p194, %p195
      %p197 = scmp.ne.s32.totalorder %s186, %s187
      %p198 = scmp.eq.s32.totalorder %s24, 0
      %p199 = por %p197, %p198
      %p200 = scmp.ne.s32.totalorder %s186, %s187
      %p201 = scmp.eq.s32.totalorder %s25, 3
      %p202 = por %p200, %p201
      %p204 = scmp.ne.s32.totalorder %s187, %s203
      %p205 = scmp.eq.s32.totalorder %s25, 0
      %p206 = por %p204, %p205
      %p207 = scmp.le.s32.totalorder 1, %s19
      %p208 = scmp.lt.s32.totalorder %s19, 5
      %p209 = pnand %p207, %p208
      %p210 = pneg %p209
      // Predicated region
      $region9: #{unet_encoder_forward.1} parent=5 // pred_check
        _
      $region10: #{unet_encoder_forward.1} parent=5 // pred_check_branch
        %212 = sbr.rel (%p209) target = $region12
      $region11: #{unet_encoder_forward.1} parent=5 // pred_region
        %s213 = ssub.s32 %s19, 1
        // Predicated region
        $region13: #{unet_encoder_forward.1} parent=11 // pred_check
          %p214 = pneg %p80
        $region14: #{unet_encoder_forward.1} parent=11 // pred_check_branch
          %216 = sbr.rel (%p214) target = $region16
        $region15: #{unet_encoder_forward.1} parent=11 // pred_region
          _
        $region16: #{unet_encoder_forward.1} parent=11 // pred_fallthru
          _
        // Predicated region
        $region17: #{unet_encoder_forward.1} parent=11 // pred_check
          %p217 = pneg %p101
        $region18: #{unet_encoder_forward.1} parent=11 // pred_check_branch
          %219 = sbr.rel (%p217) target = $region20
        $region19: #{unet_encoder_forward.1} parent=11 // pred_region
          _
        $region20: #{unet_encoder_forward.1} parent=11 // pred_fallthru
          _
        // Predicated region
        $region21: #{unet_encoder_forward.1} parent=11 // pred_check
          %p220 = pneg %p122
        $region22: #{unet_encoder_forward.1} parent=11 // pred_check_branch
          %222 = sbr.rel (%p220) target = $region24
        $region23: #{unet_encoder_forward.1} parent=11 // pred_region
          _
        $region24: #{unet_encoder_forward.1} parent=11 // pred_fallthru
          _
        // Predicated region
        $region25: #{unet_encoder_forward.1} parent=11 // pred_check
          %p223 = pneg %p143
        $region26: #{unet_encoder_forward.1} parent=11 // pred_check_branch
          %225 = sbr.rel (%p223) target = $region28
        $region27: #{unet_encoder_forward.1} parent=11 // pred_region
          _
        $region28: #{unet_encoder_forward.1} parent=11 // pred_fallthru
          _
      $region12: #{unet_encoder_forward.1} parent=5 // pred_fallthru
        _
      %p226 = scmp.lt.s32.totalorder %s19, 4
      // Predicated region
      $region29: #{unet_encoder_forward.1} parent=5 // pred_check
        %p227 = pneg %p226
      $region30: #{unet_encoder_forward.1} parent=5 // pred_check_branch
        %229 = sbr.rel (%p227) target = $region32
      $region31: #{unet_encoder_forward.1} parent=5 // pred_region
        // Predicated region
        $region33: #{unet_encoder_forward.1} parent=31 // pred_check
          %p230 = pneg %p53
        $region34: #{unet_encoder_forward.1} parent=31 // pred_check_branch
          %232 = sbr.rel (%p230) target = $region36
        $region35: #{unet_encoder_forward.1} parent=31 // pred_region
          %p233 = scmp.lt.s32.totalorder %s26, 1
          %s234 = scalar_select %p233, %s26, 1
          %p235 = scmp.lt.s32.totalorder %s27, 1
          %s236 = scalar_select %p235, %s27, 1
          %s237 = smul.addr %s236, 20
          %s238 = smul.addr %s234, 40
          %s239 = sadd.s32 %s237, %s238
          %s240 = smul.addr %s239, 4
          %s241 = scalar_lea.vmem %s0, %s240
        $region36: #{unet_encoder_forward.1} parent=31 // pred_fallthru
          _
      $region32: #{unet_encoder_forward.1} parent=5 // pred_fallthru
        _
      %p242 = scmp.le.s32.totalorder 1, %s19
      %p243 = scmp.lt.s32.totalorder %s19, 5
      %p244 = pnand %p242, %p243
      %p245 = pneg %p244
      // Predicated region
      $region37: #{unet_encoder_forward.1} parent=5 // pred_check
        _
      $region38: #{unet_encoder_forward.1} parent=5 // pred_check_branch
        %247 = sbr.rel (%p244) target = $region40
      $region39: #{unet_encoder_forward.1} parent=5 // pred_region
        %s248 = ssub.s32 %s19, 1
        %p249 = scmp.lt.s32.totalorder %s28, 1
        %s250 = scalar_select %p249, %s28, 1
        %p251 = scmp.lt.s32.totalorder %s29, 1
        %s252 = scalar_select %p251, %s29, 1
        %s253 = smul.addr %s252, 20
        %s254 = smul.addr %s250, 40
        %s255 = sadd.s32 %s253, %s254
        %s256 = smul.addr %s255, 4
        %s257 = scalar_lea.vmem %s0, %s256
        %p258 = pneg %p59
        %p259 = pneg %p56
        %p260 = pneg %p80
        %p261 = pneg %p77
        %p262 = pneg %p101
        %p263 = pneg %p98
        %p264 = pneg %p122
        %p265 = pneg %p119
        %p266 = pneg %p143
        %p267 = pneg %p140
        %p268 = pneg %p171
        %p269 = pneg %p168
        %s270 = sand.u32 %s158, 1
        %s271 = scalar_lea.sflag [#allocation6], %s270
        %s272 = sand.u32 %s158, 1
        %s273 = smul.addr %s272, 128
        %s274 = scalar_lea.vmem [#allocation5], %s273
        %p275 = pneg %p199
        %p276 = pneg %p196
        %s277 = sand.u32 %s186, 1
        %s278 = scalar_lea.sflag [#allocation8], %s277
        %s279 = sand.u32 %s186, 1
        %s280 = smul.addr %s279, 32
        %s281 = scalar_lea.vmem [#allocation7], %s280
        %p282 = scmp.lt.s32.totalorder %s28, 1
        %s283 = scalar_select %p282, %s28, 1
        %p284 = scmp.lt.s32.totalorder %s29, 1
        %s285 = scalar_select %p284, %s29, 1
        %s286 = smul.addr %s285, 20
        %s287 = smul.addr %s283, 40
        %s288 = sadd.s32 %s286, %s287
        %s289 = smul.addr %s288, 4
        %s290 = scalar_lea.vmem %s0, %s289
        %s291 = smul.u32 8, %s29
        %s292 = smul.u32 4, %s29
        %v294 = vld [vmem:[%s290] sm:$0xf]
        %v295 = vld [vmem:[%s290 + $0x4] sm:$0xf]
        %v296 = vld [vmem:[%s290 + $0x8] sm:$0xf]
        %v297 = vld [vmem:[%s290 + $0xc] sm:$0xf]
        %v298 = vld [vmem:[%s290 + $0x10] sm:$0xf]
        %v299 = vld [vmem:[%s290 + $0x14] sm:$0xf]
        %v300 = vld [vmem:[%s290 + $0x18] sm:$0xf]
        %v301 = vld [vmem:[%s290 + $0x1c] sm:$0xf]
        %v302 = vld [vmem:[%s290 + $0x20] sm:$0xf]
        %v303 = vld [vmem:[%s290 + $0x24] sm:$0xf]
        %v304 = vld [vmem:[%s290 + $0x28] sm:$0xf]
        %v305 = vld [vmem:[%s290 + $0x2c] sm:$0xf]
        %v306 = vld [vmem:[%s290 + $0x30] sm:$0xf]
        %v307 = vld [vmem:[%s290 + $0x34] sm:$0xf]
        %v308 = vld [vmem:[%s290 + $0x38] sm:$0xf]
        %v309 = vld [vmem:[%s290 + $0x3c] sm:$0xf]
        %v310 = vld [vmem:[%s290 + $0x40] sm:$0xf]
        %v311 = vld [vmem:[%s290 + $0x44] sm:$0xf]
        %v312 = vld [vmem:[%s290 + $0x48] sm:$0xf]
        %v313 = vld [vmem:[%s290 + $0x4c] sm:$0xf]
        %v314 = vld [vmem:[%s1] sm:$0xf]
        %v315 = vld [vmem:[%s1 + $0x4] sm:$0xf]
        %v316 = vld [vmem:[%s1 + $0x8] sm:$0xf]
        %v317 = vld [vmem:[%s1 + $0xc] sm:$0x3]
        %v318 = vld [vmem:[%s2] sm:$0x1]
        %v320 = vperm.slane %v318, 0
        %v342 = vunpack.c.l.b16 %v294
        %v343 = vunpack.c.l.b16 %v295
        %v344 = vunpack.c.l.b16 %v296
        %v345 = vunpack.c.l.b16 %v297
        %v346 = vunpack.c.l.b16 %v298
        %v347 = vunpack.c.l.b16 %v299
        %v348 = vunpack.c.l.b16 %v300
        %v349 = vunpack.c.l.b16 %v301
        %v350 = vunpack.c.l.b16 %v302
        %v351 = vunpack.c.l.b16 %v303
        %v352 = vunpack.c.l.b16 %v304
        %v353 = vunpack.c.l.b16 %v305
        %v354 = vunpack.c.l.b16 %v306
        %v355 = vunpack.c.l.b16 %v307
        %v356 = vunpack.c.l.b16 %v308
        %v357 = vunpack.c.l.b16 %v309
        %v358 = vunpack.c.l.b16 %v310
        %v359 = vunpack.c.l.b16 %v311
        %v360 = vunpack.c.l.b16 %v312
        %v361 = vunpack.c.l.b16 %v313
        %v362 = vpack.c.b16 %v343, %v342
        %v363 = vpack.c.b16 %v345, %v344
        %v364 = vpack.c.b16 %v347, %v346
        %v365 = vpack.c.b16 %v349, %v348
        %v366 = vpack.c.b16 %v351, %v350
        %v367 = vpack.c.b16 %v353, %v352
        %v368 = vpack.c.b16 %v355, %v354
        %v369 = vpack.c.b16 %v357, %v356
        %v370 = vpack.c.b16 %v359, %v358
        %v371 = vpack.c.b16 %v361, %v360
        %v376 = vunpack.c.l.b16 %v314
        %v377 = vunpack.c.l.b16 %v315
        %v378 = vunpack.c.l.b16 %v316
        %v379 = vunpack.c.l.b16 %v317
        %v380 = vpack.c.b16 %v377, %v376
        %v381 = vpack.c.b16 %v379, %v378
        %vm383 = vcmask 220160
        %v385 = vsel %vm383, %v362, 0
        %v388 = vsel %vm383, %v363, 0
        %v391 = vsel %vm383, %v364, 0
        %v394 = vsel %vm383, %v365, 0
        %v397 = vsel %vm383, %v366, 0
        %v400 = vsel %vm383, %v367, 0
        %v403 = vsel %vm383, %v368, 0
        %v406 = vsel %vm383, %v369, 0
        %v409 = vsel %vm383, %v370, 0
        %v412 = vsel %vm383, %v371, 0
        %vm414 = vcmask 1044480
        %vm415 = vcmask 1045504
        %v416 = vsel %vm414, 4294967295, 65535
        %v417 = vsel %vm415, %v416, 0
        %v419 = vand.u32 %v381, %v417
        %421 = vmatpush.bf16.msra.mxu0 0
        %422 = vmatpush.bf16.msra.mxu0 0
        %423 = vmatpush.bf16.msra.mxu0 0
        %424 = vmatpush.bf16.msra.mxu0 0
        %425 = vmatpush.bf16.msra.mxu0 0
        %426 = vmatpush.bf16.msra.mxu0 0
        %427 = vmatpush.bf16.msra.mxu0 %v419
        %428 = vmatpush.bf16.msra.mxu0 %v380
        %429 = vmatmul.bf16.gmra.mxu0 %v385
        %v430 = vpop.f32.mrf.mxu0
        %v431 = vadd.f32 %v320, %v430
        %v432 = vpop.f32.mrf.mxu0
        %v433 = vadd.f32 %v320, %v432
        %434 = vmatmul.bf16.gmra.mxu0 %v388
        %v435 = vpop.f32.mrf.mxu0
        %v436 = vadd.f32 %v320, %v435
        %v437 = vpop.f32.mrf.mxu0
        %v438 = vadd.f32 %v320, %v437
        %439 = vmatmul.bf16.gmra.mxu0 %v391
        %v440 = vpop.f32.mrf.mxu0
        %v441 = vadd.f32 %v320, %v440
        %v442 = vpop.f32.mrf.mxu0
        %v443 = vadd.f32 %v320, %v442
        %444 = vmatmul.bf16.gmra.mxu0 %v394
        %v445 = vpop.f32.mrf.mxu0
        %v446 = vadd.f32 %v320, %v445
        %v447 = vpop.f32.mrf.mxu0
        %v448 = vadd.f32 %v320, %v447
        %449 = vmatmul.bf16.gmra.mxu0 %v397
        %v450 = vpop.f32.mrf.mxu0
        %v451 = vadd.f32 %v320, %v450
        %v452 = vpop.f32.mrf.mxu0
        %v453 = vadd.f32 %v320, %v452
        %454 = vmatmul.bf16.gmra.mxu0 %v400
        %v455 = vpop.f32.mrf.mxu0
        %v456 = vadd.f32 %v320, %v455
        %v457 = vpop.f32.mrf.mxu0
        %v458 = vadd.f32 %v320, %v457
        %459 = vmatmul.bf16.gmra.mxu0 %v403
        %v460 = vpop.f32.mrf.mxu0
        %v461 = vadd.f32 %v320, %v460
        %v462 = vpop.f32.mrf.mxu0
        %v463 = vadd.f32 %v320, %v462
        %464 = vmatmul.bf16.gmra.mxu0 %v406
        %v465 = vpop.f32.mrf.mxu0
        %v466 = vadd.f32 %v320, %v465
        %v467 = vpop.f32.mrf.mxu0
        %v468 = vadd.f32 %v320, %v467
        %469 = vmatmul.bf16.gmra.mxu0 %v409
        %v470 = vpop.f32.mrf.mxu0
        %v471 = vadd.f32 %v320, %v470
        %v472 = vpop.f32.mrf.mxu0
        %v473 = vadd.f32 %v320, %v472
        %474 = vmatmul.bf16.gmra.mxu0 %v412
        %v475 = vpop.f32.mrf.mxu0
        %v476 = vadd.f32 %v320, %v475
        %v477 = vpop.f32.mrf.mxu0
        %v478 = vadd.f32 %v320, %v477
        %479 = vdwg.mxu0
        %v480 = vmax.f32 %v431, 0.0
        %v481 = vmax.f32 %v433, 0.0
        %v482 = vmax.f32 %v436, 0.0
        %v483 = vmax.f32 %v438, 0.0
        %v484 = vmax.f32 %v441, 0.0
        %v485 = vmax.f32 %v443, 0.0
        %v486 = vmax.f32 %v446, 0.0
        %v487 = vmax.f32 %v448, 0.0
        %v488 = vmax.f32 %v451, 0.0
        %v489 = vmax.f32 %v453, 0.0
        %v490 = vmax.f32 %v456, 0.0
        %v491 = vmax.f32 %v458, 0.0
        %v492 = vmax.f32 %v461, 0.0
        %v493 = vmax.f32 %v463, 0.0
        %v494 = vmax.f32 %v466, 0.0
        %v495 = vmax.f32 %v468, 0.0
        %v496 = vmax.f32 %v471, 0.0
        %v497 = vmax.f32 %v473, 0.0
        %v498 = vmax.f32 %v476, 0.0
        %v499 = vmax.f32 %v478, 0.0
        %vm500 = vcmask 523264
        %501 = vst.msk [vmem:[#allocation2 + $0x8] sm:$0xff] %vm500, %v480
        %502 = vst.msk [vmem:[#allocation2 + $0x10] sm:$0xff] %vm500, %v481
        %503 = vst.msk [vmem:[#allocation2 + $0x28] sm:$0xff] %vm500, %v482
        %504 = vst.msk [vmem:[#allocation2 + $0x30] sm:$0xff] %vm500, %v483
        %505 = vst.msk [vmem:[#allocation2 + $0x48] sm:$0xff] %vm500, %v484
        %506 = vst.msk [vmem:[#allocation2 + $0x50] sm:$0xff] %vm500, %v485
        %507 = vst.msk [vmem:[#allocation2 + $0x68] sm:$0xff] %vm500, %v486
        %508 = vst.msk [vmem:[#allocation2 + $0x70] sm:$0xff] %vm500, %v487
        %509 = vst.msk [vmem:[#allocation2 + $0x88] sm:$0xff] %vm500, %v488
        %510 = vst.msk [vmem:[#allocation2 + $0x90] sm:$0xff] %vm500, %v489
        %511 = vst.msk [vmem:[#allocation2 + $0xa8] sm:$0xff] %vm500, %v490
        %512 = vst.msk [vmem:[#allocation2 + $0xb0] sm:$0xff] %vm500, %v491
        %513 = vst.msk [vmem:[#allocation2 + $0xc8] sm:$0xff] %vm500, %v492
        %514 = vst.msk [vmem:[#allocation2 + $0xd0] sm:$0xff] %vm500, %v493
        %515 = vst.msk [vmem:[#allocation2 + $0xe8] sm:$0xff] %vm500, %v494
        %516 = vst.msk [vmem:[#allocation2 + $0xf0] sm:$0xff] %vm500, %v495
        %517 = vst.msk [vmem:[#allocation2 + $0x108] sm:$0xff] %vm500, %v496
        %518 = vst.msk [vmem:[#allocation2 + $0x110] sm:$0xff] %vm500, %v497
        %519 = vst.msk [vmem:[#allocation2 + $0x128] sm:$0xff] %vm500, %v498
        %520 = vst.msk [vmem:[#allocation2 + $0x130] sm:$0xff] %vm500, %v499
        %521 = vst.msk [vmem:[#allocation2] sm:$0xff] %vm500, 0.0
        %522 = vst.msk [vmem:[#allocation2 + $0x20] sm:$0xff] %vm500, 0.0
        %523 = vst.msk [vmem:[#allocation2 + $0x40] sm:$0xff] %vm500, 0.0
        %524 = vst.msk [vmem:[#allocation2 + $0x60] sm:$0xff] %vm500, 0.0
        %525 = vst.msk [vmem:[#allocation2 + $0x80] sm:$0xff] %vm500, 0.0
        %526 = vst.msk [vmem:[#allocation2 + $0xa0] sm:$0xff] %vm500, 0.0
        %527 = vst.msk [vmem:[#allocation2 + $0xc0] sm:$0xff] %vm500, 0.0
        %528 = vst.msk [vmem:[#allocation2 + $0xe0] sm:$0xff] %vm500, 0.0
        %529 = vst.msk [vmem:[#allocation2 + $0x100] sm:$0xff] %vm500, 0.0
        %530 = vst.msk [vmem:[#allocation2 + $0x120] sm:$0xff] %vm500, 0.0
        %531 = vst.msk [vmem:[#allocation2 + $0x18] sm:$0xff] %vm500, 0.0
        %532 = vst.msk [vmem:[#allocation2 + $0x38] sm:$0xff] %vm500, 0.0
        %533 = vst.msk [vmem:[#allocation2 + $0x58] sm:$0xff] %vm500, 0.0
        %534 = vst.msk [vmem:[#allocation2 + $0x78] sm:$0xff] %vm500, 0.0
        %535 = vst.msk [vmem:[#allocation2 + $0x98] sm:$0xff] %vm500, 0.0
        %536 = vst.msk [vmem:[#allocation2 + $0xb8] sm:$0xff] %vm500, 0.0
        %537 = vst.msk [vmem:[#allocation2 + $0xd8] sm:$0xff] %vm500, 0.0
        %538 = vst.msk [vmem:[#allocation2 + $0xf8] sm:$0xff] %vm500, 0.0
        %539 = vst.msk [vmem:[#allocation2 + $0x118] sm:$0xff] %vm500, 0.0
        %540 = vst.msk [vmem:[#allocation2 + $0x138] sm:$0xff] %vm500, 0.0
        %p541 = scmp.eq.s32.totalorder %s29, 0
        // Predicated region
        $region41: #{unet_encoder_forward.1} parent=39 // pred_check
          %p542 = pneg %p541
        $region42: #{unet_encoder_forward.1} parent=39 // pred_check_branch
          %544 = sbr.rel (%p542) target = $region44
        $region43: #{unet_encoder_forward.1} parent=39 // pred_region
          %545 = vst.msk [vmem:[#allocation2] sm:$0xff] %vm500, 0.0
          %546 = vst.msk [vmem:[#allocation2 + $0x8] sm:$0xff] %vm500, 0.0
          %547 = vst.msk [vmem:[#allocation2 + $0x10] sm:$0xff] %vm500, 0.0
          %548 = vst.msk [vmem:[#allocation2 + $0x18] sm:$0xff] %vm500, 0.0
        $region44: #{unet_encoder_forward.1} parent=39 // pred_fallthru
          _
        %p549 = scmp.eq.s32.totalorder %s29, 1
        // Predicated region
        $region45: #{unet_encoder_forward.1} parent=39 // pred_check
          %p550 = pneg %p549
        $region46: #{unet_encoder_forward.1} parent=39 // pred_check_branch
          %552 = sbr.rel (%p550) target = $region48
        $region47: #{unet_encoder_forward.1} parent=39 // pred_region
          %s553 = scalar_lea.vmem [#allocation2], 288
          %554 = vst.msk [vmem:[%s553] sm:$0xff] %vm500, 0.0
          %555 = vst.msk [vmem:[%s553 + $0x8] sm:$0xff] %vm500, 0.0
          %556 = vst.msk [vmem:[%s553 + $0x10] sm:$0xff] %vm500, 0.0
          %557 = vst.msk [vmem:[%s553 + $0x18] sm:$0xff] %vm500, 0.0
        $region48: #{unet_encoder_forward.1} parent=39 // pred_fallthru
          _
        %v558 = vld [vmem:[#allocation2 + $0x7] sm:$0xff]
        %v559 = vld [vmem:[#allocation2 + $0xf] sm:$0xff]
        %v560 = vld [vmem:[#allocation2 + $0x27] sm:$0xff]
        %v561 = vld [vmem:[#allocation2 + $0x2f] sm:$0xff]
        %v562 = vld [vmem:[#allocation2 + $0x47] sm:$0xff]
        %v563 = vld [vmem:[#allocation2 + $0x4f] sm:$0xff]
        %v564 = vld [vmem:[#allocation2 + $0x67] sm:$0xff]
        %v565 = vld [vmem:[#allocation2 + $0x6f] sm:$0xff]
        %v566 = vld [vmem:[#allocation2 + $0x87] sm:$0xff]
        %v567 = vld [vmem:[#allocation2 + $0x8f] sm:$0xff]
        %v568 = vld [vmem:[#allocation2 + $0xa7] sm:$0xff]
        %v569 = vld [vmem:[#allocation2 + $0xaf] sm:$0xff]
        %v570 = vld [vmem:[#allocation2 + $0xc7] sm:$0xff]
        %v571 = vld [vmem:[#allocation2 + $0xcf] sm:$0xff]
        %v572 = vld [vmem:[#allocation2 + $0xe7] sm:$0xff]
        %v573 = vld [vmem:[#allocation2 + $0xef] sm:$0xff]
        %v574 = vld [vmem:[#allocation2 + $0x107] sm:$0xff]
        %v575 = vld [vmem:[#allocation2 + $0x10f] sm:$0xff]
        %v576 = vld [vmem:[#allocation2 + $0x127] sm:$0xff]
        %v577 = vld [vmem:[#allocation2 + $0x12f] sm:$0xff]
        %v578 = vpack.c.bf16 %v558, %v558
        %v579 = vpack.c.bf16 %v559, %v559
        %v580 = vpack.c.bf16 %v560, %v560
        %v581 = vpack.c.bf16 %v561, %v561
        %v582 = vpack.c.bf16 %v562, %v562
        %v583 = vpack.c.bf16 %v563, %v563
        %v584 = vpack.c.bf16 %v564, %v564
        %v585 = vpack.c.bf16 %v565, %v565
        %v586 = vpack.c.bf16 %v566, %v566
        %v587 = vpack.c.bf16 %v567, %v567
        %v588 = vpack.c.bf16 %v568, %v568
        %v589 = vpack.c.bf16 %v569, %v569
        %v590 = vpack.c.bf16 %v570, %v570
        %v591 = vpack.c.bf16 %v571, %v571
        %v592 = vpack.c.bf16 %v572, %v572
        %v593 = vpack.c.bf16 %v573, %v573
        %v594 = vpack.c.bf16 %v574, %v574
        %v595 = vpack.c.bf16 %v575, %v575
        %v596 = vpack.c.bf16 %v576, %v576
        %v597 = vpack.c.bf16 %v577, %v577
        %v598 = vld [vmem:[#allocation2 + $0x8] sm:$0xff]
        %v599 = vld [vmem:[#allocation2 + $0x10] sm:$0xff]
        %v600 = vld [vmem:[#allocation2 + $0x28] sm:$0xff]
        %v601 = vld [vmem:[#allocation2 + $0x30] sm:$0xff]
        %v602 = vld [vmem:[#allocation2 + $0x48] sm:$0xff]
        %v603 = vld [vmem:[#allocation2 + $0x50] sm:$0xff]
        %v604 = vld [vmem:[#allocation2 + $0x68] sm:$0xff]
        %v605 = vld [vmem:[#allocation2 + $0x70] sm:$0xff]
        %v606 = vld [vmem:[#allocation2 + $0x88] sm:$0xff]
        %v607 = vld [vmem:[#allocation2 + $0x90] sm:$0xff]
        %v608 = vld [vmem:[#allocation2 + $0xa8] sm:$0xff]
        %v609 = vld [vmem:[#allocation2 + $0xb0] sm:$0xff]
        %v610 = vld [vmem:[#allocation2 + $0xc8] sm:$0xff]
        %v611 = vld [vmem:[#allocation2 + $0xd0] sm:$0xff]
        %v612 = vld [vmem:[#allocation2 + $0xe8] sm:$0xff]
        %v613 = vld [vmem:[#allocation2 + $0xf0] sm:$0xff]
        %v614 = vld [vmem:[#allocation2 + $0x108] sm:$0xff]
        %v615 = vld [vmem:[#allocation2 + $0x110] sm:$0xff]
        %v616 = vld [vmem:[#allocation2 + $0x128] sm:$0xff]
        %v617 = vld [vmem:[#allocation2 + $0x130] sm:$0xff]
        %v618 = vpack.c.bf16 %v598, %v598
        %v619 = vpack.c.bf16 %v599, %v599
        %v620 = vpack.c.bf16 %v600, %v600
        %v621 = vpack.c.bf16 %v601, %v601
        %v622 = vpack.c.bf16 %v602, %v602
        %v623 = vpack.c.bf16 %v603, %v603
        %v624 = vpack.c.bf16 %v604, %v604
        %v625 = vpack.c.bf16 %v605, %v605
        %v626 = vpack.c.bf16 %v606, %v606
        %v627 = vpack.c.bf16 %v607, %v607
        %v628 = vpack.c.bf16 %v608, %v608
        %v629 = vpack.c.bf16 %v609, %v609
        %v630 = vpack.c.bf16 %v610, %v610
        %v631 = vpack.c.bf16 %v611, %v611
        %v632 = vpack.c.bf16 %v612, %v612
        %v633 = vpack.c.bf16 %v613, %v613
        %v634 = vpack.c.bf16 %v614, %v614
        %v635 = vpack.c.bf16 %v615, %v615
        %v636 = vpack.c.bf16 %v616, %v616
        %v637 = vpack.c.bf16 %v617, %v617
        %v638 = vld [vmem:[#allocation2 + $0x9] sm:$0xff]
        %v639 = vld [vmem:[#allocation2 + $0x11] sm:$0xff]
        %v640 = vld [vmem:[#allocation2 + $0x29] sm:$0xff]
        %v641 = vld [vmem:[#allocation2 + $0x31] sm:$0xff]
        %v642 = vld [vmem:[#allocation2 + $0x49] sm:$0xff]
        %v643 = vld [vmem:[#allocation2 + $0x51] sm:$0xff]
        %v644 = vld [vmem:[#allocation2 + $0x69] sm:$0xff]
        %v645 = vld [vmem:[#allocation2 + $0x71] sm:$0xff]
        %v646 = vld [vmem:[#allocation2 + $0x89] sm:$0xff]
        %v647 = vld [vmem:[#allocation2 + $0x91] sm:$0xff]
        %v648 = vld [vmem:[#allocation2 + $0xa9] sm:$0xff]
        %v649 = vld [vmem:[#allocation2 + $0xb1] sm:$0xff]
        %v650 = vld [vmem:[#allocation2 + $0xc9] sm:$0xff]
        %v651 = vld [vmem:[#allocation2 + $0xd1] sm:$0xff]
        %v652 = vld [vmem:[#allocation2 + $0xe9] sm:$0xff]
        %v653 = vld [vmem:[#allocation2 + $0xf1] sm:$0xff]
        %v654 = vld [vmem:[#allocation2 + $0x109] sm:$0xff]
        %v655 = vld [vmem:[#allocation2 + $0x111] sm:$0xff]
        %v656 = vld [vmem:[#allocation2 + $0x129] sm:$0xff]
        %v657 = vld [vmem:[#allocation2 + $0x131] sm:$0xff]
        %v658 = vpack.c.bf16 %v638, %v638
        %v659 = vpack.c.bf16 %v639, %v639
        %v660 = vpack.c.bf16 %v640, %v640
        %v661 = vpack.c.bf16 %v641, %v641
        %v662 = vpack.c.bf16 %v642, %v642
        %v663 = vpack.c.bf16 %v643, %v643
        %v664 = vpack.c.bf16 %v644, %v644
        %v665 = vpack.c.bf16 %v645, %v645
        %v666 = vpack.c.bf16 %v646, %v646
        %v667 = vpack.c.bf16 %v647, %v647
        %v668 = vpack.c.bf16 %v648, %v648
        %v669 = vpack.c.bf16 %v649, %v649
        %v670 = vpack.c.bf16 %v650, %v650
        %v671 = vpack.c.bf16 %v651, %v651
        %v672 = vpack.c.bf16 %v652, %v652
        %v673 = vpack.c.bf16 %v653, %v653
        %v674 = vpack.c.bf16 %v654, %v654
        %v675 = vpack.c.bf16 %v655, %v655
        %v676 = vpack.c.bf16 %v656, %v656
        %v677 = vpack.c.bf16 %v657, %v657
        %v698 = vunpack.c.l.b16 %v578
        %v699 = vunpack.c.l.b16 %v579
        %v700 = vunpack.c.l.b16 %v580
        %v701 = vunpack.c.l.b16 %v581
        %v702 = vunpack.c.l.b16 %v582
        %v703 = vunpack.c.l.b16 %v583
        %v704 = vunpack.c.l.b16 %v584
        %v705 = vunpack.c.l.b16 %v585
        %v706 = vunpack.c.l.b16 %v586
        %v707 = vunpack.c.l.b16 %v587
        %v708 = vunpack.c.l.b16 %v588
        %v709 = vunpack.c.l.b16 %v589
        %v710 = vunpack.c.l.b16 %v590
        %v711 = vunpack.c.l.b16 %v591
        %v712 = vunpack.c.l.b16 %v592
        %v713 = vunpack.c.l.b16 %v593
        %v714 = vunpack.c.l.b16 %v594
        %v715 = vunpack.c.l.b16 %v595
        %v716 = vunpack.c.l.b16 %v596
        %v717 = vunpack.c.l.b16 %v597
        %v718 = vpack.c.b16 %v699, %v698
        %v719 = vpack.c.b16 %v701, %v700
        %v720 = vpack.c.b16 %v703, %v702
        %v721 = vpack.c.b16 %v705, %v704
        %v722 = vpack.c.b16 %v707, %v706
        %v723 = vpack.c.b16 %v709, %v708
        %v724 = vpack.c.b16 %v711, %v710
        %v725 = vpack.c.b16 %v713, %v712
        %v726 = vpack.c.b16 %v715, %v714
        %v727 = vpack.c.b16 %v717, %v716
        %v748 = vunpack.c.l.b16 %v618
        %v749 = vunpack.c.l.b16 %v619
        %v750 = vunpack.c.l.b16 %v620
        %v751 = vunpack.c.l.b16 %v621
        %v752 = vunpack.c.l.b16 %v622
        %v753 = vunpack.c.l.b16 %v623
        %v754 = vunpack.c.l.b16 %v624
        %v755 = vunpack.c.l.b16 %v625
        %v756 = vunpack.c.l.b16 %v626
        %v757 = vunpack.c.l.b16 %v627
        %v758 = vunpack.c.l.b16 %v628
        %v759 = vunpack.c.l.b16 %v629
        %v760 = vunpack.c.l.b16 %v630
        %v761 = vunpack.c.l.b16 %v631
        %v762 = vunpack.c.l.b16 %v632
        %v763 = vunpack.c.l.b16 %v633
        %v764 = vunpack.c.l.b16 %v634
        %v765 = vunpack.c.l.b16 %v635
        %v766 = vunpack.c.l.b16 %v636
        %v767 = vunpack.c.l.b16 %v637
        %v768 = vpack.c.b16 %v749, %v748
        %v769 = vpack.c.b16 %v751, %v750
        %v770 = vpack.c.b16 %v753, %v752
        %v771 = vpack.c.b16 %v755, %v754
        %v772 = vpack.c.b16 %v757, %v756
        %v773 = vpack.c.b16 %v759, %v758
        %v774 = vpack.c.b16 %v761, %v760
        %v775 = vpack.c.b16 %v763, %v762
        %v776 = vpack.c.b16 %v765, %v764
        %v777 = vpack.c.b16 %v767, %v766
        %778 = vrot.lane.b32.xlu0 %v768, 64
        %v779 = vpop.permute.xlu0 %778
        %780 = vrot.lane.b32.xlu0 %v769, 64
        %v781 = vpop.permute.xlu0 %780
        %782 = vrot.lane.b32.xlu0 %v770, 64
        %v783 = vpop.permute.xlu0 %782
        %784 = vrot.lane.b32.xlu0 %v771, 64
        %v785 = vpop.permute.xlu0 %784
        %786 = vrot.lane.b32.xlu0 %v772, 64
        %v787 = vpop.permute.xlu0 %786
        %788 = vrot.lane.b32.xlu0 %v773, 64
        %v789 = vpop.permute.xlu0 %788
        %790 = vrot.lane.b32.xlu0 %v774, 64
        %v791 = vpop.permute.xlu0 %790
        %792 = vrot.lane.b32.xlu0 %v775, 64
        %v793 = vpop.permute.xlu0 %792
        %794 = vrot.lane.b32.xlu0 %v776, 64
        %v795 = vpop.permute.xlu0 %794
        %796 = vrot.lane.b32.xlu0 %v777, 64
        %v797 = vpop.permute.xlu0 %796
        %v818 = vunpack.c.l.b16 %v658
        %v819 = vunpack.c.l.b16 %v659
        %v820 = vunpack.c.l.b16 %v660
        %v821 = vunpack.c.l.b16 %v661
        %v822 = vunpack.c.l.b16 %v662
        %v823 = vunpack.c.l.b16 %v663
        %v824 = vunpack.c.l.b16 %v664
        %v825 = vunpack.c.l.b16 %v665
        %v826 = vunpack.c.l.b16 %v666
        %v827 = vunpack.c.l.b16 %v667
        %v828 = vunpack.c.l.b16 %v668
        %v829 = vunpack.c.l.b16 %v669
        %v830 = vunpack.c.l.b16 %v670
        %v831 = vunpack.c.l.b16 %v671
        %v832 = vunpack.c.l.b16 %v672
        %v833 = vunpack.c.l.b16 %v673
        %v834 = vunpack.c.l.b16 %v674
        %v835 = vunpack.c.l.b16 %v675
        %v836 = vunpack.c.l.b16 %v676
        %v837 = vunpack.c.l.b16 %v677
        %v840 = vsel %vm500, %v718, %v779
        %v843 = vsel %vm500, %v719, %v781
        %v846 = vsel %vm500, %v720, %v783
        %v849 = vsel %vm500, %v721, %v785
        %v852 = vsel %vm500, %v722, %v787
        %v855 = vsel %vm500, %v723, %v789
        %v858 = vsel %vm500, %v724, %v791
        %v861 = vsel %vm500, %v725, %v793
        %v864 = vsel %vm500, %v726, %v795
        %v867 = vsel %vm500, %v727, %v797
        %v878 = vunpack.c.l.b16 %v840
        %v879 = vunpack.c.h.b16 %v840
        %v880 = vunpack.c.l.b16 %v843
        %v881 = vunpack.c.h.b16 %v843
        %v882 = vunpack.c.l.b16 %v846
        %v883 = vunpack.c.h.b16 %v846
        %v884 = vunpack.c.l.b16 %v849
        %v885 = vunpack.c.h.b16 %v849
        %v886 = vunpack.c.l.b16 %v852
        %v887 = vunpack.c.h.b16 %v852
        %v888 = vunpack.c.l.b16 %v855
        %v889 = vunpack.c.h.b16 %v855
        %v890 = vunpack.c.l.b16 %v858
        %v891 = vunpack.c.h.b16 %v858
        %v892 = vunpack.c.l.b16 %v861
        %v893 = vunpack.c.h.b16 %v861
        %v894 = vunpack.c.l.b16 %v864
        %v895 = vunpack.c.h.b16 %v864
        %v896 = vunpack.c.l.b16 %v867
        %v897 = vunpack.c.h.b16 %v867
        %v898 = vpack.c.b16 %v818, %v878
        %v899 = vpack.c.b16 %v819, %v879
        %v900 = vpack.c.b16 %v820, %v880
        %v901 = vpack.c.b16 %v821, %v881
        %v902 = vpack.c.b16 %v822, %v882
        %v903 = vpack.c.b16 %v823, %v883
        %v904 = vpack.c.b16 %v824, %v884
        %v905 = vpack.c.b16 %v825, %v885
        %v906 = vpack.c.b16 %v826, %v886
        %v907 = vpack.c.b16 %v827, %v887
        %v908 = vpack.c.b16 %v828, %v888
        %v909 = vpack.c.b16 %v829, %v889
        %v910 = vpack.c.b16 %v830, %v890
        %v911 = vpack.c.b16 %v831, %v891
        %v912 = vpack.c.b16 %v832, %v892
        %v913 = vpack.c.b16 %v833, %v893
        %v914 = vpack.c.b16 %v834, %v894
        %v915 = vpack.c.b16 %v835, %v895
        %v916 = vpack.c.b16 %v836, %v896
        %v917 = vpack.c.b16 %v837, %v897
        %vm938 = vcmask 1043456
        %vm939 = vcmask 523268
        %vm940 = vmor %vm939, %vm938
        %941 = vst.msk [vmem:[#allocation3] sm:$0xff] %vm940, %v898
        %942 = vst.msk [vmem:[#allocation3 + $0x8] sm:$0xff] %vm940, %v899
        %943 = vst.msk [vmem:[#allocation3 + $0x10] sm:$0xff] %vm940, %v900
        %944 = vst.msk [vmem:[#allocation3 + $0x18] sm:$0xff] %vm940, %v901
        %945 = vst.msk [vmem:[#allocation3 + $0x20] sm:$0xff] %vm940, %v902
        %946 = vst.msk [vmem:[#allocation3 + $0x28] sm:$0xff] %vm940, %v903
        %947 = vst.msk [vmem:[#allocation3 + $0x30] sm:$0xff] %vm940, %v904
        %948 = vst.msk [vmem:[#allocation3 + $0x38] sm:$0xff] %vm940, %v905
        %949 = vst.msk [vmem:[#allocation3 + $0x40] sm:$0xff] %vm940, %v906
        %950 = vst.msk [vmem:[#allocation3 + $0x48] sm:$0xff] %vm940, %v907
        %951 = vst.msk [vmem:[#allocation3 + $0x50] sm:$0xff] %vm940, %v908
        %952 = vst.msk [vmem:[#allocation3 + $0x58] sm:$0xff] %vm940, %v909
        %953 = vst.msk [vmem:[#allocation3 + $0x60] sm:$0xff] %vm940, %v910
        %954 = vst.msk [vmem:[#allocation3 + $0x68] sm:$0xff] %vm940, %v911
        %955 = vst.msk [vmem:[#allocation3 + $0x70] sm:$0xff] %vm940, %v912
        %956 = vst.msk [vmem:[#allocation3 + $0x78] sm:$0xff] %vm940, %v913
        %957 = vst.msk [vmem:[#allocation3 + $0x80] sm:$0xff] %vm940, %v914
        %958 = vst.msk [vmem:[#allocation3 + $0x88] sm:$0xff] %vm940, %v915
        %959 = vst.msk [vmem:[#allocation3 + $0x90] sm:$0xff] %vm940, %v916
        %960 = vst.msk [vmem:[#allocation3 + $0x98] sm:$0xff] %vm940, %v917
        %v961 = vld [vmem:[#allocation3] sm:$0xff]
        %v962 = vld [vmem:[#allocation3 + $0x8] sm:$0xff]
        %v963 = vld [vmem:[#allocation3 + $0x10] sm:$0xff]
        %v964 = vld [vmem:[#allocation3 + $0x18] sm:$0xff]
        %v965 = vld [vmem:[#allocation3 + $0x20] sm:$0xff]
        %v966 = vld [vmem:[#allocation3 + $0x28] sm:$0xff]
        %v967 = vld [vmem:[#allocation3 + $0x30] sm:$0xff]
        %v968 = vld [vmem:[#allocation3 + $0x38] sm:$0xff]
        %v969 = vld [vmem:[#allocation3 + $0x40] sm:$0xff]
        %v970 = vld [vmem:[#allocation3 + $0x48] sm:$0xff]
        %v971 = vld [vmem:[#allocation3 + $0x50] sm:$0xff]
        %v972 = vld [vmem:[#allocation3 + $0x58] sm:$0xff]
        %v973 = vld [vmem:[#allocation3 + $0x60] sm:$0xff]
        %v974 = vld [vmem:[#allocation3 + $0x68] sm:$0xff]
        %v975 = vld [vmem:[#allocation3 + $0x70] sm:$0xff]
        %v976 = vld [vmem:[#allocation3 + $0x78] sm:$0xff]
        %v977 = vld [vmem:[%s3] sm:$0xf]
        %v978 = vld [vmem:[%s3 + $0x4] sm:$0xf]
        %v979 = vld [vmem:[%s3 + $0x8] sm:$0xf]
        %v980 = vld [vmem:[%s3 + $0xc] sm:$0xf]
        %v981 = vld [vmem:[%s3 + $0x10] sm:$0xf]
        %v982 = vld [vmem:[%s3 + $0x14] sm:$0xf]
        %v983 = vld [vmem:[%s3 + $0x18] sm:$0xf]
        %v984 = vld [vmem:[%s3 + $0x1c] sm:$0xf]
        %v985 = vld [vmem:[%s3 + $0x20] sm:$0xf]
        %v986 = vld [vmem:[%s3 + $0x24] sm:$0xf]
        %v987 = vld [vmem:[%s3 + $0x28] sm:$0xf]
        %v988 = vld [vmem:[%s3 + $0x2c] sm:$0xf]
        %v989 = vld [vmem:[%s3 + $0x30] sm:$0xf]
        %v990 = vld [vmem:[%s3 + $0x34] sm:$0xf]
        %v991 = vld [vmem:[%s3 + $0x38] sm:$0xf]
        %v992 = vld [vmem:[%s3 + $0x3c] sm:$0xf]
        %v993 = vld [vmem:[%s3 + $0x40] sm:$0xf]
        %v994 = vld [vmem:[%s3 + $0x44] sm:$0xf]
        %v995 = vld [vmem:[%s3 + $0x48] sm:$0xf]
        %v996 = vld [vmem:[%s3 + $0x4c] sm:$0xf]
        %v997 = vld [vmem:[%s3 + $0x50] sm:$0xf]
        %v998 = vld [vmem:[%s3 + $0x54] sm:$0xf]
        %v999 = vld [vmem:[%s3 + $0x58] sm:$0xf]
        %v1000 = vld [vmem:[%s3 + $0x5c] sm:$0xf]
        %v1001 = vld [vmem:[#allocation3 + $0x80] sm:$0xff]
        %v1002 = vld [vmem:[#allocation3 + $0x88] sm:$0xff]
        %s1003 = scalar_lea.vmem %s3, 96
        %v1004 = vld [vmem:[%s1003] sm:$0xf]
        %v1005 = vld [vmem:[%s1003 + $0x4] sm:$0xf]
        %v1006 = vld [vmem:[%s1003 + $0x8] sm:$0xf]
        %v1007 = vld [vmem:[%s1003 + $0xc] sm:$0xf]
        %v1008 = vld [vmem:[%s1003 + $0x10] sm:$0xf]
        %v1009 = vld [vmem:[%s1003 + $0x14] sm:$0xf]
        %v1010 = vld [vmem:[%s1003 + $0x18] sm:$0xf]
        %v1011 = vld [vmem:[%s1003 + $0x1c] sm:$0xf]
        %v1012 = vld [vmem:[%s1003 + $0x20] sm:$0xf]
        %v1013 = vld [vmem:[%s1003 + $0x24] sm:$0xf]
        %v1014 = vld [vmem:[%s1003 + $0x28] sm:$0xf]
        %v1015 = vld [vmem:[%s1003 + $0x2c] sm:$0xf]
        %v1016 = vld [vmem:[%s1003 + $0x30] sm:$0xf]
        %v1017 = vld [vmem:[%s1003 + $0x34] sm:$0xf]
        %v1018 = vld [vmem:[%s1003 + $0x38] sm:$0xf]
        %v1019 = vld [vmem:[%s1003 + $0x3c] sm:$0xf]
        %v1020 = vld [vmem:[%s1003 + $0x40] sm:$0xf]
        %v1021 = vld [vmem:[%s1003 + $0x44] sm:$0xf]
        %v1022 = vld [vmem:[%s1003 + $0x48] sm:$0xf]
        %v1023 = vld [vmem:[%s1003 + $0x4c] sm:$0xf]
        %v1024 = vld [vmem:[%s1003 + $0x50] sm:$0xf]
        %v1025 = vld [vmem:[%s1003 + $0x54] sm:$0xf]
        %v1026 = vld [vmem:[%s1003 + $0x58] sm:$0xf]
        %v1027 = vld [vmem:[%s1003 + $0x5c] sm:$0xf]
        %v1044 = vunpack.c.l.b16 %v963
        %v1045 = vunpack.c.h.b16 %v963
        %v1046 = vunpack.c.l.b16 %v964
        %v1047 = vunpack.c.h.b16 %v964
        %v1048 = vunpack.c.l.b16 %v965
        %v1049 = vunpack.c.h.b16 %v965
        %v1050 = vunpack.c.l.b16 %v966
        %v1051 = vunpack.c.h.b16 %v966
        %v1052 = vunpack.c.l.b16 %v967
        %v1053 = vunpack.c.h.b16 %v967
        %v1054 = vunpack.c.l.b16 %v968
        %v1055 = vunpack.c.h.b16 %v968
        %v1056 = vunpack.c.l.b16 %v969
        %v1057 = vunpack.c.h.b16 %v969
        %v1058 = vunpack.c.l.b16 %v970
        %v1059 = vunpack.c.h.b16 %v970
        %v1060 = vunpack.c.l.b16 %v971
        %v1061 = vunpack.c.h.b16 %v971
        %v1062 = vunpack.c.l.b16 %v972
        %v1063 = vunpack.c.h.b16 %v972
        %v1064 = vunpack.c.l.b16 %v973
        %v1065 = vunpack.c.h.b16 %v973
        %v1066 = vunpack.c.l.b16 %v974
        %v1067 = vunpack.c.h.b16 %v974
        %v1068 = vunpack.c.l.b16 %v975
        %v1069 = vunpack.c.h.b16 %v975
        %v1070 = vunpack.c.l.b16 %v976
        %v1071 = vunpack.c.h.b16 %v976
        %v1072 = vunpack.c.l.b16 %v1001
        %v1073 = vunpack.c.h.b16 %v1001
        %v1074 = vunpack.c.l.b16 %v1002
        %v1075 = vunpack.c.h.b16 %v1002
        %v1076 = vpack.c.b16 %v1046, %v1044
        %v1077 = vpack.c.b16 %v1047, %v1045
        %v1078 = vpack.c.b16 %v1050, %v1048
        %v1079 = vpack.c.b16 %v1051, %v1049
        %v1080 = vpack.c.b16 %v1054, %v1052
        %v1081 = vpack.c.b16 %v1055, %v1053
        %v1082 = vpack.c.b16 %v1058, %v1056
        %v1083 = vpack.c.b16 %v1059, %v1057
        %v1084 = vpack.c.b16 %v1062, %v1060
        %v1085 = vpack.c.b16 %v1063, %v1061
        %v1086 = vpack.c.b16 %v1066, %v1064
        %v1087 = vpack.c.b16 %v1067, %v1065
        %v1088 = vpack.c.b16 %v1070, %v1068
        %v1089 = vpack.c.b16 %v1071, %v1069
        %v1090 = vpack.c.b16 %v1074, %v1072
        %v1091 = vpack.c.b16 %v1075, %v1073
        %v1124 = vunpack.c.l.b16 %v1004
        %v1125 = vunpack.c.l.b16 %v1005
        %v1126 = vunpack.c.l.b16 %v1006
        %v1127 = vunpack.c.l.b16 %v1007
        %v1128 = vunpack.c.l.b16 %v1008
        %v1129 = vunpack.c.l.b16 %v1009
        %v1130 = vunpack.c.l.b16 %v1010
        %v1131 = vunpack.c.l.b16 %v1011
        %v1132 = vunpack.c.l.b16 %v1012
        %v1133 = vunpack.c.l.b16 %v1013
        %v1134 = vunpack.c.l.b16 %v1014
        %v1135 = vunpack.c.l.b16 %v1015
        %v1136 = vunpack.c.l.b16 %v1016
        %v1137 = vunpack.c.l.b16 %v1017
        %v1138 = vunpack.c.l.b16 %v1018
        %v1139 = vunpack.c.l.b16 %v1019
        %v1140 = vunpack.c.l.b16 %v1020
        %v1141 = vunpack.c.l.b16 %v1021
        %v1142 = vunpack.c.l.b16 %v1022
        %v1143 = vunpack.c.l.b16 %v1023
        %v1144 = vunpack.c.l.b16 %v1024
        %v1145 = vunpack.c.l.b16 %v1025
        %v1146 = vunpack.c.l.b16 %v1026
        %v1147 = vunpack.c.l.b16 %v1027
        %v1148 = vpack.c.b16 %v1125, %v1124
        %v1149 = vpack.c.b16 %v1127, %v1126
        %v1150 = vpack.c.b16 %v1129, %v1128
        %v1151 = vpack.c.b16 %v1131, %v1130
        %v1152 = vpack.c.b16 %v1133, %v1132
        %v1153 = vpack.c.b16 %v1135, %v1134
        %v1154 = vpack.c.b16 %v1137, %v1136
        %v1155 = vpack.c.b16 %v1139, %v1138
        %v1156 = vpack.c.b16 %v1141, %v1140
        %v1157 = vpack.c.b16 %v1143, %v1142
        %v1158 = vpack.c.b16 %v1145, %v1144
        %v1159 = vpack.c.b16 %v1147, %v1146
        %v1173 = vsel %vm500, %v1077, 0
        %v1176 = vsel %vm500, %v1079, 0
        %v1179 = vsel %vm500, %v1081, 0
        %v1182 = vsel %vm500, %v1083, 0
        %v1185 = vsel %vm500, %v1085, 0
        %v1188 = vsel %vm500, %v1087, 0
        %v1191 = vsel %vm500, %v1089, 0
        %v1194 = vsel %vm500, %v1091, 0
        %1196 = vmatpush.bf16.msra.mxu0 %v1155
        %1197 = vmatpush.bf16.msra.mxu0 %v1154
        %1198 = vmatpush.bf16.msra.mxu0 %v1153
        %1199 = vmatpush.bf16.msra.mxu0 %v1152
        %1200 = vmatpush.bf16.msra.mxu0 %v1151
        %1201 = vmatpush.bf16.msra.mxu0 %v1150
        %1202 = vmatpush.bf16.msra.mxu0 %v1149
        %1203 = vmatpush.bf16.msra.mxu0 %v1148
        %1204 = vmatmul.bf16.gmra.mxu0 %v1076
        %v1205 = vpop.f32.mrf.mxu0
        %v1206 = vadd.f32 0.0, %v1205
        %v1207 = vpop.f32.mrf.mxu0
        %v1208 = vadd.f32 0.0, %v1207
        %1209 = vmatmul.bf16.gmra.mxu0 %v1078
        %v1210 = vpop.f32.mrf.mxu0
        %v1211 = vadd.f32 0.0, %v1210
        %v1212 = vpop.f32.mrf.mxu0
        %v1213 = vadd.f32 0.0, %v1212
        %1214 = vmatmul.bf16.gmra.mxu0 %v1080
        %v1215 = vpop.f32.mrf.mxu0
        %v1216 = vadd.f32 0.0, %v1215
        %v1217 = vpop.f32.mrf.mxu0
        %v1218 = vadd.f32 0.0, %v1217
        %1219 = vmatmul.bf16.gmra.mxu0 %v1082
        %v1220 = vpop.f32.mrf.mxu0
        %v1221 = vadd.f32 0.0, %v1220
        %v1222 = vpop.f32.mrf.mxu0
        %v1223 = vadd.f32 0.0, %v1222
        %1224 = vmatmul.bf16.gmra.mxu0 %v1084
        %v1225 = vpop.f32.mrf.mxu0
        %v1226 = vadd.f32 0.0, %v1225
        %v1227 = vpop.f32.mrf.mxu0
        %v1228 = vadd.f32 0.0, %v1227
        %1229 = vmatmul.bf16.gmra.mxu0 %v1086
        %v1230 = vpop.f32.mrf.mxu0
        %v1231 = vadd.f32 0.0, %v1230
        %v1232 = vpop.f32.mrf.mxu0
        %v1233 = vadd.f32 0.0, %v1232
        %1234 = vmatmul.bf16.gmra.mxu0 %v1088
        %v1235 = vpop.f32.mrf.mxu0
        %v1236 = vadd.f32 0.0, %v1235
        %v1237 = vpop.f32.mrf.mxu0
        %v1238 = vadd.f32 0.0, %v1237
        %1239 = vmatmul.bf16.gmra.mxu0 %v1090
        %v1240 = vpop.f32.mrf.mxu0
        %v1241 = vadd.f32 0.0, %v1240
        %v1242 = vpop.f32.mrf.mxu0
        %v1243 = vadd.f32 0.0, %v1242
        %1244 = vdwg.mxu0
        %1245 = vmatpush.bf16.msra.mxu0 0
        %1246 = vmatpush.bf16.msra.mxu0 0
        %1247 = vmatpush.bf16.msra.mxu0 0
        %1248 = vmatpush.bf16.msra.mxu0 0
        %1249 = vmatpush.bf16.msra.mxu0 %v1159
        %1250 = vmatpush.bf16.msra.mxu0 %v1158
        %1251 = vmatpush.bf16.msra.mxu0 %v1157
        %1252 = vmatpush.bf16.msra.mxu0 %v1156
        %1253 = vmatmul.bf16.gmra.mxu0 %v1173
        %v1254 = vpop.f32.mrf.mxu0
        %v1255 = vadd.f32 %v1206, %v1254
        %v1256 = vpop.f32.mrf.mxu0
        %v1257 = vadd.f32 %v1208, %v1256
        %1258 = vmatmul.bf16.gmra.mxu0 %v1176
        %v1259 = vpop.f32.mrf.mxu0
        %v1260 = vadd.f32 %v1211, %v1259
        %v1261 = vpop.f32.mrf.mxu0
        %v1262 = vadd.f32 %v1213, %v1261
        %1263 = vmatmul.bf16.gmra.mxu0 %v1179
        %v1264 = vpop.f32.mrf.mxu0
        %v1265 = vadd.f32 %v1216, %v1264
        %v1266 = vpop.f32.mrf.mxu0
        %v1267 = vadd.f32 %v1218, %v1266
        %1268 = vmatmul.bf16.gmra.mxu0 %v1182
        %v1269 = vpop.f32.mrf.mxu0
        %v1270 = vadd.f32 %v1221, %v1269
        %v1271 = vpop.f32.mrf.mxu0
        %v1272 = vadd.f32 %v1223, %v1271
        %1273 = vmatmul.bf16.gmra.mxu0 %v1185
        %v1274 = vpop.f32.mrf.mxu0
        %v1275 = vadd.f32 %v1226, %v1274
        %v1276 = vpop.f32.mrf.mxu0
        %v1277 = vadd.f32 %v1228, %v1276
        %1278 = vmatmul.bf16.gmra.mxu0 %v1188
        %v1279 = vpop.f32.mrf.mxu0
        %v1280 = vadd.f32 %v1231, %v1279
        %v1281 = vpop.f32.mrf.mxu0
        %v1282 = vadd.f32 %v1233, %v1281
        %1283 = vmatmul.bf16.gmra.mxu0 %v1191
        %v1284 = vpop.f32.mrf.mxu0
        %v1285 = vadd.f32 %v1236, %v1284
        %v1286 = vpop.f32.mrf.mxu0
        %v1287 = vadd.f32 %v1238, %v1286
        %1288 = vmatmul.bf16.gmra.mxu0 %v1194
        %v1289 = vpop.f32.mrf.mxu0
        %v1290 = vadd.f32 %v1241, %v1289
        %v1291 = vpop.f32.mrf.mxu0
        %v1292 = vadd.f32 %v1243, %v1291
        %1293 = vdwg.mxu0
        %v1296 = vunpack.c.l.b16 %v961
        %v1297 = vunpack.c.h.b16 %v961
        %v1298 = vunpack.c.l.b16 %v962
        %v1299 = vunpack.c.h.b16 %v962
        %v1300 = vpack.c.b16 %v1298, %v1296
        %v1301 = vpack.c.b16 %v1299, %v1297
        %v1327 = vunpack.c.l.b16 %v977
        %v1328 = vunpack.c.l.b16 %v978
        %v1329 = vunpack.c.l.b16 %v979
        %v1330 = vunpack.c.l.b16 %v980
        %v1331 = vunpack.c.l.b16 %v981
        %v1332 = vunpack.c.l.b16 %v982
        %v1333 = vunpack.c.l.b16 %v983
        %v1334 = vunpack.c.l.b16 %v984
        %v1335 = vunpack.c.l.b16 %v985
        %v1336 = vunpack.c.l.b16 %v986
        %v1337 = vunpack.c.l.b16 %v987
        %v1338 = vunpack.c.l.b16 %v988
        %v1339 = vunpack.c.l.b16 %v989
        %v1340 = vunpack.c.l.b16 %v990
        %v1341 = vunpack.c.l.b16 %v991
        %v1342 = vunpack.c.l.b16 %v992
        %v1343 = vunpack.c.l.b16 %v993
        %v1344 = vunpack.c.l.b16 %v994
        %v1345 = vunpack.c.l.b16 %v995
        %v1346 = vunpack.c.l.b16 %v996
        %v1347 = vunpack.c.l.b16 %v997
        %v1348 = vunpack.c.l.b16 %v998
        %v1349 = vunpack.c.l.b16 %v999
        %v1350 = vunpack.c.l.b16 %v1000
        %v1351 = vpack.c.b16 %v1328, %v1327
        %v1352 = vpack.c.b16 %v1330, %v1329
        %v1353 = vpack.c.b16 %v1332, %v1331
        %v1354 = vpack.c.b16 %v1334, %v1333
        %v1355 = vpack.c.b16 %v1336, %v1335
        %v1356 = vpack.c.b16 %v1338, %v1337
        %v1357 = vpack.c.b16 %v1340, %v1339
        %v1358 = vpack.c.b16 %v1342, %v1341
        %v1359 = vpack.c.b16 %v1344, %v1343
        %v1360 = vpack.c.b16 %v1346, %v1345
        %v1361 = vpack.c.b16 %v1348, %v1347
        %v1362 = vpack.c.b16 %v1350, %v1349
        %v1376 = vsel %vm500, %v1301, 0
        %1378 = vmatpush.bf16.msra.mxu0 %v1358
        %1379 = vmatpush.bf16.msra.mxu0 %v1357
        %1380 = vmatpush.bf16.msra.mxu0 %v1356
        %1381 = vmatpush.bf16.msra.mxu0 %v1355
        %1382 = vmatpush.bf16.msra.mxu0 %v1354
        %1383 = vmatpush.bf16.msra.mxu0 %v1353
        %1384 = vmatpush.bf16.msra.mxu0 %v1352
        %1385 = vmatpush.bf16.msra.mxu0 %v1351
        %1386 = vmatmul.bf16.gmra.mxu0 %v1300
        %v1387 = vpop.f32.mrf.mxu0
        %v1388 = vadd.f32 %v1255, %v1387
        %v1389 = vpop.f32.mrf.mxu0
        %v1390 = vadd.f32 %v1257, %v1389
        %1391 = vmatmul.bf16.gmra.mxu0 %v1076
        %v1392 = vpop.f32.mrf.mxu0
        %v1393 = vadd.f32 %v1260, %v1392
        %v1394 = vpop.f32.mrf.mxu0
        %v1395 = vadd.f32 %v1262, %v1394
        %1396 = vmatmul.bf16.gmra.mxu0 %v1078
        %v1397 = vpop.f32.mrf.mxu0
        %v1398 = vadd.f32 %v1265, %v1397
        %v1399 = vpop.f32.mrf.mxu0
        %v1400 = vadd.f32 %v1267, %v1399
        %1401 = vmatmul.bf16.gmra.mxu0 %v1080
        %v1402 = vpop.f32.mrf.mxu0
        %v1403 = vadd.f32 %v1270, %v1402
        %v1404 = vpop.f32.mrf.mxu0
        %v1405 = vadd.f32 %v1272, %v1404
        %1406 = vmatmul.bf16.gmra.mxu0 %v1082
        %v1407 = vpop.f32.mrf.mxu0
        %v1408 = vadd.f32 %v1275, %v1407
        %v1409 = vpop.f32.mrf.mxu0
        %v1410 = vadd.f32 %v1277, %v1409
        %1411 = vmatmul.bf16.gmra.mxu0 %v1084
        %v1412 = vpop.f32.mrf.mxu0
        %v1413 = vadd.f32 %v1280, %v1412
        %v1414 = vpop.f32.mrf.mxu0
        %v1415 = vadd.f32 %v1282, %v1414
        %1416 = vmatmul.bf16.gmra.mxu0 %v1086
        %v1417 = vpop.f32.mrf.mxu0
        %v1418 = vadd.f32 %v1285, %v1417
        %v1419 = vpop.f32.mrf.mxu0
        %v1420 = vadd.f32 %v1287, %v1419
        %1421 = vmatmul.bf16.gmra.mxu0 %v1088
        %v1422 = vpop.f32.mrf.mxu0
        %v1423 = vadd.f32 %v1290, %v1422
        %v1424 = vpop.f32.mrf.mxu0
        %v1425 = vadd.f32 %v1292, %v1424
        %1426 = vdwg.mxu0
        %1427 = vmatpush.bf16.msra.mxu0 0
        %1428 = vmatpush.bf16.msra.mxu0 0
        %1429 = vmatpush.bf16.msra.mxu0 0
        %1430 = vmatpush.bf16.msra.mxu0 0
        %1431 = vmatpush.bf16.msra.mxu0 %v1362
        %1432 = vmatpush.bf16.msra.mxu0 %v1361
        %1433 = vmatpush.bf16.msra.mxu0 %v1360
        %1434 = vmatpush.bf16.msra.mxu0 %v1359
        %1435 = vmatmul.bf16.gmra.mxu0 %v1376
        %v1436 = vpop.f32.mrf.mxu0
        %v1437 = vadd.f32 %v1388, %v1436
        %v1438 = vpop.f32.mrf.mxu0
        %v1439 = vadd.f32 %v1390, %v1438
        %1440 = vmatmul.bf16.gmra.mxu0 %v1173
        %v1441 = vpop.f32.mrf.mxu0
        %v1442 = vadd.f32 %v1393, %v1441
        %v1443 = vpop.f32.mrf.mxu0
        %v1444 = vadd.f32 %v1395, %v1443
        %1445 = vmatmul.bf16.gmra.mxu0 %v1176
        %v1446 = vpop.f32.mrf.mxu0
        %v1447 = vadd.f32 %v1398, %v1446
        %v1448 = vpop.f32.mrf.mxu0
        %v1449 = vadd.f32 %v1400, %v1448
        %1450 = vmatmul.bf16.gmra.mxu0 %v1179
        %v1451 = vpop.f32.mrf.mxu0
        %v1452 = vadd.f32 %v1403, %v1451
        %v1453 = vpop.f32.mrf.mxu0
        %v1454 = vadd.f32 %v1405, %v1453
        %1455 = vmatmul.bf16.gmra.mxu0 %v1182
        %v1456 = vpop.f32.mrf.mxu0
        %v1457 = vadd.f32 %v1408, %v1456
        %v1458 = vpop.f32.mrf.mxu0
        %v1459 = vadd.f32 %v1410, %v1458
        %1460 = vmatmul.bf16.gmra.mxu0 %v1185
        %v1461 = vpop.f32.mrf.mxu0
        %v1462 = vadd.f32 %v1413, %v1461
        %v1463 = vpop.f32.mrf.mxu0
        %v1464 = vadd.f32 %v1415, %v1463
        %1465 = vmatmul.bf16.gmra.mxu0 %v1188
        %v1466 = vpop.f32.mrf.mxu0
        %v1467 = vadd.f32 %v1418, %v1466
        %v1468 = vpop.f32.mrf.mxu0
        %v1469 = vadd.f32 %v1420, %v1468
        %1470 = vmatmul.bf16.gmra.mxu0 %v1191
        %v1471 = vpop.f32.mrf.mxu0
        %v1472 = vadd.f32 %v1423, %v1471
        %v1473 = vpop.f32.mrf.mxu0
        %v1474 = vadd.f32 %v1425, %v1473
        %1475 = vdwg.mxu0
        %v1476 = vld [vmem:[#allocation3 + $0x20] sm:$0xff]
        %v1477 = vld [vmem:[#allocation3 + $0x28] sm:$0xff]
        %v1478 = vld [vmem:[#allocation3 + $0x30] sm:$0xff]
        %v1479 = vld [vmem:[#allocation3 + $0x38] sm:$0xff]
        %v1480 = vld [vmem:[#allocation3 + $0x40] sm:$0xff]
        %v1481 = vld [vmem:[#allocation3 + $0x48] sm:$0xff]
        %v1482 = vld [vmem:[#allocation3 + $0x50] sm:$0xff]
        %v1483 = vld [vmem:[#allocation3 + $0x58] sm:$0xff]
        %v1484 = vld [vmem:[#allocation3 + $0x60] sm:$0xff]
        %v1485 = vld [vmem:[#allocation3 + $0x68] sm:$0xff]
        %v1486 = vld [vmem:[#allocation3 + $0x70] sm:$0xff]
        %v1487 = vld [vmem:[#allocation3 + $0x78] sm:$0xff]
        %v1488 = vld [vmem:[#allocation3 + $0x80] sm:$0xff]
        %v1489 = vld [vmem:[#allocation3 + $0x88] sm:$0xff]
        %v1490 = vld [vmem:[#allocation3 + $0x90] sm:$0xff]
        %v1491 = vld [vmem:[#allocation3 + $0x98] sm:$0xff]
        %s1492 = scalar_lea.vmem %s3, 192
        %v1493 = vld [vmem:[%s1492] sm:$0xf]
        %v1494 = vld [vmem:[%s1492 + $0x4] sm:$0xf]
        %v1495 = vld [vmem:[%s1492 + $0x8] sm:$0xf]
        %v1496 = vld [vmem:[%s1492 + $0xc] sm:$0xf]
        %v1497 = vld [vmem:[%s1492 + $0x10] sm:$0xf]
        %v1498 = vld [vmem:[%s1492 + $0x14] sm:$0xf]
        %v1499 = vld [vmem:[%s1492 + $0x18] sm:$0xf]
        %v1500 = vld [vmem:[%s1492 + $0x1c] sm:$0xf]
        %v1501 = vld [vmem:[%s1492 + $0x20] sm:$0xf]
        %v1502 = vld [vmem:[%s1492 + $0x24] sm:$0xf]
        %v1503 = vld [vmem:[%s1492 + $0x28] sm:$0xf]
        %v1504 = vld [vmem:[%s1492 + $0x2c] sm:$0xf]
        %v1505 = vld [vmem:[%s1492 + $0x30] sm:$0xf]
        %v1506 = vld [vmem:[%s1492 + $0x34] sm:$0xf]
        %v1507 = vld [vmem:[%s1492 + $0x38] sm:$0xf]
        %v1508 = vld [vmem:[%s1492 + $0x3c] sm:$0xf]
        %v1509 = vld [vmem:[%s1492 + $0x40] sm:$0xf]
        %v1510 = vld [vmem:[%s1492 + $0x44] sm:$0xf]
        %v1511 = vld [vmem:[%s1492 + $0x48] sm:$0xf]
        %v1512 = vld [vmem:[%s1492 + $0x4c] sm:$0xf]
        %v1513 = vld [vmem:[%s1492 + $0x50] sm:$0xf]
        %v1514 = vld [vmem:[%s1492 + $0x54] sm:$0xf]
        %v1515 = vld [vmem:[%s1492 + $0x58] sm:$0xf]
        %v1516 = vld [vmem:[%s1492 + $0x5c] sm:$0xf]
        %v1533 = vunpack.c.l.b16 %v1476
        %v1534 = vunpack.c.h.b16 %v1476
        %v1535 = vunpack.c.l.b16 %v1477
        %v1536 = vunpack.c.h.b16 %v1477
        %v1537 = vunpack.c.l.b16 %v1478
        %v1538 = vunpack.c.h.b16 %v1478
        %v1539 = vunpack.c.l.b16 %v1479
        %v1540 = vunpack.c.h.b16 %v1479
        %v1541 = vunpack.c.l.b16 %v1480
        %v1542 = vunpack.c.h.b16 %v1480
        %v1543 = vunpack.c.l.b16 %v1481
        %v1544 = vunpack.c.h.b16 %v1481
        %v1545 = vunpack.c.l.b16 %v1482
        %v1546 = vunpack.c.h.b16 %v1482
        %v1547 = vunpack.c.l.b16 %v1483
        %v1548 = vunpack.c.h.b16 %v1483
        %v1549 = vunpack.c.l.b16 %v1484
        %v1550 = vunpack.c.h.b16 %v1484
        %v1551 = vunpack.c.l.b16 %v1485
        %v1552 = vunpack.c.h.b16 %v1485
        %v1553 = vunpack.c.l.b16 %v1486
        %v1554 = vunpack.c.h.b16 %v1486
        %v1555 = vunpack.c.l.b16 %v1487
        %v1556 = vunpack.c.h.b16 %v1487
        %v1557 = vunpack.c.l.b16 %v1488
        %v1558 = vunpack.c.h.b16 %v1488
        %v1559 = vunpack.c.l.b16 %v1489
        %v1560 = vunpack.c.h.b16 %v1489
        %v1561 = vunpack.c.l.b16 %v1490
        %v1562 = vunpack.c.h.b16 %v1490
        %v1563 = vunpack.c.l.b16 %v1491
        %v1564 = vunpack.c.h.b16 %v1491
        %v1565 = vpack.c.b16 %v1535, %v1533
        %v1566 = vpack.c.b16 %v1536, %v1534
        %v1567 = vpack.c.b16 %v1539, %v1537
        %v1568 = vpack.c.b16 %v1540, %v1538
        %v1569 = vpack.c.b16 %v1543, %v1541
        %v1570 = vpack.c.b16 %v1544, %v1542
        %v1571 = vpack.c.b16 %v1547, %v1545
        %v1572 = vpack.c.b16 %v1548, %v1546
        %v1573 = vpack.c.b16 %v1551, %v1549
        %v1574 = vpack.c.b16 %v1552, %v1550
        %v1575 = vpack.c.b16 %v1555, %v1553
        %v1576 = vpack.c.b16 %v1556, %v1554
        %v1577 = vpack.c.b16 %v1559, %v1557
        %v1578 = vpack.c.b16 %v1560, %v1558
        %v1579 = vpack.c.b16 %v1563, %v1561
        %v1580 = vpack.c.b16 %v1564, %v1562
        %v1613 = vunpack.c.l.b16 %v1493
        %v1614 = vunpack.c.l.b16 %v1494
        %v1615 = vunpack.c.l.b16 %v1495
        %v1616 = vunpack.c.l.b16 %v1496
        %v1617 = vunpack.c.l.b16 %v1497
        %v1618 = vunpack.c.l.b16 %v1498
        %v1619 = vunpack.c.l.b16 %v1499
        %v1620 = vunpack.c.l.b16 %v1500
        %v1621 = vunpack.c.l.b16 %v1501
        %v1622 = vunpack.c.l.b16 %v1502
        %v1623 = vunpack.c.l.b16 %v1503
        %v1624 = vunpack.c.l.b16 %v1504
        %v1625 = vunpack.c.l.b16 %v1505
        %v1626 = vunpack.c.l.b16 %v1506
        %v1627 = vunpack.c.l.b16 %v1507
        %v1628 = vunpack.c.l.b16 %v1508
        %v1629 = vunpack.c.l.b16 %v1509
        %v1630 = vunpack.c.l.b16 %v1510
        %v1631 = vunpack.c.l.b16 %v1511
        %v1632 = vunpack.c.l.b16 %v1512
        %v1633 = vunpack.c.l.b16 %v1513
        %v1634 = vunpack.c.l.b16 %v1514
        %v1635 = vunpack.c.l.b16 %v1515
        %v1636 = vunpack.c.l.b16 %v1516
        %v1637 = vpack.c.b16 %v1614, %v1613
        %v1638 = vpack.c.b16 %v1616, %v1615
        %v1639 = vpack.c.b16 %v1618, %v1617
        %v1640 = vpack.c.b16 %v1620, %v1619
        %v1641 = vpack.c.b16 %v1622, %v1621
        %v1642 = vpack.c.b16 %v1624, %v1623
        %v1643 = vpack.c.b16 %v1626, %v1625
        %v1644 = vpack.c.b16 %v1628, %v1627
        %v1645 = vpack.c.b16 %v1630, %v1629
        %v1646 = vpack.c.b16 %v1632, %v1631
        %v1647 = vpack.c.b16 %v1634, %v1633
        %v1648 = vpack.c.b16 %v1636, %v1635
        %v1662 = vsel %vm500, %v1566, 0
        %v1665 = vsel %vm500, %v1568, 0
        %v1668 = vsel %vm500, %v1570, 0
        %v1671 = vsel %vm500, %v1572, 0
        %v1674 = vsel %vm500, %v1574, 0
        %v1677 = vsel %vm500, %v1576, 0
        %v1680 = vsel %vm500, %v1578, 0
        %v1683 = vsel %vm500, %v1580, 0
        %1685 = vmatpush.bf16.msra.mxu0 %v1644
        %1686 = vmatpush.bf16.msra.mxu0 %v1643
        %1687 = vmatpush.bf16.msra.mxu0 %v1642
        %1688 = vmatpush.bf16.msra.mxu0 %v1641
        %1689 = vmatpush.bf16.msra.mxu0 %v1640
        %1690 = vmatpush.bf16.msra.mxu0 %v1639
        %1691 = vmatpush.bf16.msra.mxu0 %v1638
        %1692 = vmatpush.bf16.msra.mxu0 %v1637
        %1693 = vmatmul.bf16.gmra.mxu0 %v1565
        %v1694 = vpop.f32.mrf.mxu0
        %v1695 = vadd.f32 0.0, %v1694
        %v1696 = vpop.f32.mrf.mxu0
        %v1697 = vadd.f32 0.0, %v1696
        %1698 = vmatmul.bf16.gmra.mxu0 %v1567
        %v1699 = vpop.f32.mrf.mxu0
        %v1700 = vadd.f32 0.0, %v1699
        %v1701 = vpop.f32.mrf.mxu0
        %v1702 = vadd.f32 0.0, %v1701
        %1703 = vmatmul.bf16.gmra.mxu0 %v1569
        %v1704 = vpop.f32.mrf.mxu0
        %v1705 = vadd.f32 0.0, %v1704
        %v1706 = vpop.f32.mrf.mxu0
        %v1707 = vadd.f32 0.0, %v1706
        %1708 = vmatmul.bf16.gmra.mxu0 %v1571
        %v1709 = vpop.f32.mrf.mxu0
        %v1710 = vadd.f32 0.0, %v1709
        %v1711 = vpop.f32.mrf.mxu0
        %v1712 = vadd.f32 0.0, %v1711
        %1713 = vmatmul.bf16.gmra.mxu0 %v1573
        %v1714 = vpop.f32.mrf.mxu0
        %v1715 = vadd.f32 0.0, %v1714
        %v1716 = vpop.f32.mrf.mxu0
        %v1717 = vadd.f32 0.0, %v1716
        %1718 = vmatmul.bf16.gmra.mxu0 %v1575
        %v1719 = vpop.f32.mrf.mxu0
        %v1720 = vadd.f32 0.0, %v1719
        %v1721 = vpop.f32.mrf.mxu0
        %v1722 = vadd.f32 0.0, %v1721
        %1723 = vmatmul.bf16.gmra.mxu0 %v1577
        %v1724 = vpop.f32.mrf.mxu0
        %v1725 = vadd.f32 0.0, %v1724
        %v1726 = vpop.f32.mrf.mxu0
        %v1727 = vadd.f32 0.0, %v1726
        %1728 = vmatmul.bf16.gmra.mxu0 %v1579
        %v1729 = vpop.f32.mrf.mxu0
        %v1730 = vadd.f32 0.0, %v1729
        %v1731 = vpop.f32.mrf.mxu0
        %v1732 = vadd.f32 0.0, %v1731
        %1733 = vdwg.mxu0
        %1734 = vmatpush.bf16.msra.mxu0 0
        %1735 = vmatpush.bf16.msra.mxu0 0
        %1736 = vmatpush.bf16.msra.mxu0 0
        %1737 = vmatpush.bf16.msra.mxu0 0
        %1738 = vmatpush.bf16.msra.mxu0 %v1648
        %1739 = vmatpush.bf16.msra.mxu0 %v1647
        %1740 = vmatpush.bf16.msra.mxu0 %v1646
        %1741 = vmatpush.bf16.msra.mxu0 %v1645
        %1742 = vmatmul.bf16.gmra.mxu0 %v1662
        %v1743 = vpop.f32.mrf.mxu0
        %v1744 = vadd.f32 %v1695, %v1743
        %v1745 = vpop.f32.mrf.mxu0
        %v1746 = vadd.f32 %v1697, %v1745
        %1747 = vmatmul.bf16.gmra.mxu0 %v1665
        %v1748 = vpop.f32.mrf.mxu0
        %v1749 = vadd.f32 %v1700, %v1748
        %v1750 = vpop.f32.mrf.mxu0
        %v1751 = vadd.f32 %v1702, %v1750
        %1752 = vmatmul.bf16.gmra.mxu0 %v1668
        %v1753 = vpop.f32.mrf.mxu0
        %v1754 = vadd.f32 %v1705, %v1753
        %v1755 = vpop.f32.mrf.mxu0
        %v1756 = vadd.f32 %v1707, %v1755
        %1757 = vmatmul.bf16.gmra.mxu0 %v1671
        %v1758 = vpop.f32.mrf.mxu0
        %v1759 = vadd.f32 %v1710, %v1758
        %v1760 = vpop.f32.mrf.mxu0
        %v1761 = vadd.f32 %v1712, %v1760
        %1762 = vmatmul.bf16.gmra.mxu0 %v1674
        %v1763 = vpop.f32.mrf.mxu0
        %v1764 = vadd.f32 %v1715, %v1763
        %v1765 = vpop.f32.mrf.mxu0
        %v1766 = vadd.f32 %v1717, %v1765
        %1767 = vmatmul.bf16.gmra.mxu0 %v1677
        %v1768 = vpop.f32.mrf.mxu0
        %v1769 = vadd.f32 %v1720, %v1768
        %v1770 = vpop.f32.mrf.mxu0
        %v1771 = vadd.f32 %v1722, %v1770
        %1772 = vmatmul.bf16.gmra.mxu0 %v1680
        %v1773 = vpop.f32.mrf.mxu0
        %v1774 = vadd.f32 %v1725, %v1773
        %v1775 = vpop.f32.mrf.mxu0
        %v1776 = vadd.f32 %v1727, %v1775
        %1777 = vmatmul.bf16.gmra.mxu0 %v1683
        %v1778 = vpop.f32.mrf.mxu0
        %v1779 = vadd.f32 %v1730, %v1778
        %v1780 = vpop.f32.mrf.mxu0
        %v1781 = vadd.f32 %v1732, %v1780
        %1782 = vdwg.mxu0
        %v1783 = vadd.f32 %v1437, %v1744
        %v1784 = vadd.f32 %v1439, %v1746
        %v1785 = vadd.f32 %v1442, %v1749
        %v1786 = vadd.f32 %v1444, %v1751
        %v1787 = vadd.f32 %v1447, %v1754
        %v1788 = vadd.f32 %v1449, %v1756
        %v1789 = vadd.f32 %v1452, %v1759
        %v1790 = vadd.f32 %v1454, %v1761
        %v1791 = vadd.f32 %v1457, %v1764
        %v1792 = vadd.f32 %v1459, %v1766
        %v1793 = vadd.f32 %v1462, %v1769
        %v1794 = vadd.f32 %v1464, %v1771
        %v1795 = vadd.f32 %v1467, %v1774
        %v1796 = vadd.f32 %v1469, %v1776
        %v1797 = vadd.f32 %v1472, %v1779
        %v1798 = vadd.f32 %v1474, %v1781
        %v1799 = vld [vmem:[%s4] sm:$0x1]
        %v1801 = vperm.slane %v1799, 0
        %v1803 = vadd.f32 %v1783, %v1801
        %v1804 = vadd.f32 %v1784, %v1801
        %v1805 = vadd.f32 %v1785, %v1801
        %v1806 = vadd.f32 %v1786, %v1801
        %v1807 = vadd.f32 %v1787, %v1801
        %v1808 = vadd.f32 %v1788, %v1801
        %v1809 = vadd.f32 %v1789, %v1801
        %v1810 = vadd.f32 %v1790, %v1801
        %v1811 = vadd.f32 %v1791, %v1801
        %v1812 = vadd.f32 %v1792, %v1801
        %v1813 = vadd.f32 %v1793, %v1801
        %v1814 = vadd.f32 %v1794, %v1801
        %v1815 = vadd.f32 %v1795, %v1801
        %v1816 = vadd.f32 %v1796, %v1801
        %v1817 = vadd.f32 %v1797, %v1801
        %v1818 = vadd.f32 %v1798, %v1801
        %v1819 = vmax.f32 %v1803, 0.0
        %v1820 = vmax.f32 %v1804, 0.0
        %v1821 = vmax.f32 %v1805, 0.0
        %v1822 = vmax.f32 %v1806, 0.0
        %v1823 = vmax.f32 %v1807, 0.0
        %v1824 = vmax.f32 %v1808, 0.0
        %v1825 = vmax.f32 %v1809, 0.0
        %v1826 = vmax.f32 %v1810, 0.0
        %v1827 = vmax.f32 %v1811, 0.0
        %v1828 = vmax.f32 %v1812, 0.0
        %v1829 = vmax.f32 %v1813, 0.0
        %v1830 = vmax.f32 %v1814, 0.0
        %v1831 = vmax.f32 %v1815, 0.0
        %v1832 = vmax.f32 %v1816, 0.0
        %v1833 = vmax.f32 %v1817, 0.0
        %v1834 = vmax.f32 %v1818, 0.0
        %1835 = vst.msk [vmem:[%s274] sm:$0xff] %vm500, %v1819
        %1836 = vst.msk [vmem:[%s274 + $0x8] sm:$0xff] %vm500, %v1820
        %1837 = vst.msk [vmem:[%s274 + $0x10] sm:$0xff] %vm500, %v1821
        %1838 = vst.msk [vmem:[%s274 + $0x18] sm:$0xff] %vm500, %v1822
        %1839 = vst.msk [vmem:[%s274 + $0x20] sm:$0xff] %vm500, %v1823
        %1840 = vst.msk [vmem:[%s274 + $0x28] sm:$0xff] %vm500, %v1824
        %1841 = vst.msk [vmem:[%s274 + $0x30] sm:$0xff] %vm500, %v1825
        %1842 = vst.msk [vmem:[%s274 + $0x38] sm:$0xff] %vm500, %v1826
        %1843 = vst.msk [vmem:[%s274 + $0x40] sm:$0xff] %vm500, %v1827
        %1844 = vst.msk [vmem:[%s274 + $0x48] sm:$0xff] %vm500, %v1828
        %1845 = vst.msk [vmem:[%s274 + $0x50] sm:$0xff] %vm500, %v1829
        %1846 = vst.msk [vmem:[%s274 + $0x58] sm:$0xff] %vm500, %v1830
        %1847 = vst.msk [vmem:[%s274 + $0x60] sm:$0xff] %vm500, %v1831
        %1848 = vst.msk [vmem:[%s274 + $0x68] sm:$0xff] %vm500, %v1832
        %1849 = vst.msk [vmem:[%s274 + $0x70] sm:$0xff] %vm500, %v1833
        %1850 = vst.msk [vmem:[%s274 + $0x78] sm:$0xff] %vm500, %v1834
        %v1851 = vmax.f32 %v1819, %v1821
        %v1852 = vmax.f32 %v1820, %v1822
        %v1853 = vmax.f32 %v1823, %v1825
        %v1854 = vmax.f32 %v1824, %v1826
        %v1855 = vmax.f32 %v1827, %v1829
        %v1856 = vmax.f32 %v1828, %v1830
        %v1857 = vmax.f32 %v1831, %v1833
        %v1858 = vmax.f32 %v1832, %v1834
        %1859 = vst.msk [vmem:[#allocation4] sm:$0xff] %vm500, %v1851
        %1860 = vst.msk [vmem:[#allocation4 + $0x8] sm:$0xff] %vm500, %v1852
        %1861 = vst.msk [vmem:[#allocation4 + $0x10] sm:$0xff] %vm500, %v1853
        %1862 = vst.msk [vmem:[#allocation4 + $0x18] sm:$0xff] %vm500, %v1854
        %1863 = vst.msk [vmem:[#allocation4 + $0x20] sm:$0xff] %vm500, %v1855
        %1864 = vst.msk [vmem:[#allocation4 + $0x28] sm:$0xff] %vm500, %v1856
        %1865 = vst.msk [vmem:[#allocation4 + $0x30] sm:$0xff] %vm500, %v1857
        %1866 = vst.msk [vmem:[#allocation4 + $0x38] sm:$0xff] %vm500, %v1858
        %v1867 = vld [vmem:[#allocation4] ss:$2 sm:$0xff]
        %s1868 = scalar_lea.vmem [#allocation4], 16
        %v1869 = vld [vmem:[%s1868] ss:$2 sm:$0xff]
        %s1870 = scalar_lea.vmem [#allocation4], 32
        %v1871 = vld [vmem:[%s1870] ss:$2 sm:$0xff]
        %s1872 = scalar_lea.vmem [#allocation4], 48
        %v1873 = vld [vmem:[%s1872] ss:$2 sm:$0xff]
        %s1874 = scalar_lea.vmem [#allocation4], 1
        %v1875 = vld [vmem:[%s1874] ss:$2 sm:$0xff]
        %s1876 = scalar_lea.vmem [#allocation4], 17
        %v1877 = vld [vmem:[%s1876] ss:$2 sm:$0xff]
        %s1878 = scalar_lea.vmem [#allocation4], 33
        %v1879 = vld [vmem:[%s1878] ss:$2 sm:$0xff]
        %s1880 = scalar_lea.vmem [#allocation4], 49
        %v1881 = vld [vmem:[%s1880] ss:$2 sm:$0xff]
        %v1882 = vmax.f32 %v1867, %v1875
        %v1883 = vmax.f32 %v1869, %v1877
        %v1884 = vmax.f32 %v1871, %v1879
        %v1885 = vmax.f32 %v1873, %v1881
        %1886 = vst.msk [vmem:[%s281] sm:$0xff] %vm500, %v1882
        %1887 = vst.msk [vmem:[%s281 + $0x8] sm:$0xff] %vm500, %v1883
        %1888 = vst.msk [vmem:[%s281 + $0x10] sm:$0xff] %vm500, %v1884
        %1889 = vst.msk [vmem:[%s281 + $0x18] sm:$0xff] %vm500, %v1885
        %s1890 = sand.u32 %s158, 1
        %s1891 = scalar_lea.sflag [#allocation6], %s1890
        %s1892 = sand.u32 %s158, 1
        %s1893 = smul.addr %s1892, 128
        %s1894 = scalar_lea.vmem [#allocation5], %s1893
        %s1895 = sand.u32 %s186, 1
        %s1896 = scalar_lea.sflag [#allocation8], %s1895
        %s1897 = sand.u32 %s186, 1
        %s1898 = smul.addr %s1897, 32
        %s1899 = scalar_lea.vmem [#allocation7], %s1898
        // Predicated region
        $region49: #{unet_encoder_forward.1} parent=39 // pred_check
          %p1900 = pneg %p168
        $region50: #{unet_encoder_forward.1} parent=39 // pred_check_branch
          %1902 = sbr.rel (%p1900) target = $region52
        $region51: #{unet_encoder_forward.1} parent=39 // pred_region
          %s1903 = smul.u32 8, %s29
          %1905 = vsyncadd %s1891, 0
          %s1906 = smul.addr %s1903, 2
          %s1907 = smul.addr %s28, 32
          %s1908 = sadd.s32 %s1906, %s1907
          %s1909 = smul.addr %s1908, 8
          %s1910 = scalar_lea.hbm %s5, %s1909
          %s1911 = sshll.u32 %s1894, 4
          %s1912 = int_to_ptr.vmem [resolvable:$true] %s1911
          %s1913 = sshll.u32 %s1910, 4
          %s1914 = int_to_ptr.hbm [resolvable:$true] %s1913
          %1919 = dma.vmem_to_hbm [thread:$0]  %s1912, 2048, %s1914, %s1891, 128, 128, 8
        $region52: #{unet_encoder_forward.1} parent=39 // pred_fallthru
          _
        // Predicated region
        $region53: #{unet_encoder_forward.1} parent=39 // pred_check
          %p1920 = pneg %p196
        $region54: #{unet_encoder_forward.1} parent=39 // pred_check_branch
          %1922 = sbr.rel (%p1920) target = $region56
        $region55: #{unet_encoder_forward.1} parent=39 // pred_region
          %s1923 = smul.u32 4, %s29
          %1925 = vsyncadd %s1896, 0
          %s1926 = smul.addr %s28, 8
          %s1927 = sadd.s32 %s1923, %s1926
          %s1928 = smul.addr %s1927, 8
          %s1929 = scalar_lea.hbm %s6, %s1928
          %s1930 = sshll.u32 %s1899, 4
          %s1931 = int_to_ptr.vmem [resolvable:$true] %s1930
          %s1932 = sshll.u32 %s1929, 4
          %s1933 = int_to_ptr.hbm [resolvable:$true] %s1932
          %1938 = dma.vmem_to_hbm [thread:$0]  %s1931, 512, %s1933, %s1896, 128, 128, 8
        $region56: #{unet_encoder_forward.1} parent=39 // pred_fallthru
          _
      $region40: #{unet_encoder_forward.1} parent=5 // pred_fallthru
        _
      %p1939 = scmp.le.s32.totalorder 2, %s19
      // Predicated region
      $region57: #{unet_encoder_forward.1} parent=5 // pred_check
        %p1940 = pneg %p1939
      $region58: #{unet_encoder_forward.1} parent=5 // pred_check_branch
        %1942 = sbr.rel (%p1940) target = $region60
      $region59: #{unet_encoder_forward.1} parent=5 // pred_region
        %s1943 = ssub.s32 %s19, 2
        // Predicated region
        $region61: #{unet_encoder_forward.1} parent=59 // pred_check
          %p1944 = pneg %p174
        $region62: #{unet_encoder_forward.1} parent=59 // pred_check_branch
          %1946 = sbr.rel (%p1944) target = $region64
        $region63: #{unet_encoder_forward.1} parent=59 // pred_region
          %s1947 = sand.u32 %s159, 1
          %s1948 = scalar_lea.sflag [#allocation6], %s1947
          %s1949 = sand.u32 %s159, 1
          %s1950 = smul.addr %s1949, 128
          %s1951 = scalar_lea.vmem [#allocation5], %s1950
          %1953 = dma.done %s1948, 2048
        $region64: #{unet_encoder_forward.1} parent=59 // pred_fallthru
          _
        // Predicated region
        $region65: #{unet_encoder_forward.1} parent=59 // pred_check
          %p1954 = pneg %p202
        $region66: #{unet_encoder_forward.1} parent=59 // pred_check_branch
          %1956 = sbr.rel (%p1954) target = $region68
        $region67: #{unet_encoder_forward.1} parent=59 // pred_region
          %s1957 = sand.u32 %s187, 1
          %s1958 = scalar_lea.sflag [#allocation8], %s1957
          %s1959 = sand.u32 %s187, 1
          %s1960 = smul.addr %s1959, 32
          %s1961 = scalar_lea.vmem [#allocation7], %s1960
          %1963 = dma.done %s1958, 512
        $region68: #{unet_encoder_forward.1} parent=59 // pred_fallthru
          _
      $region60: #{unet_encoder_forward.1} parent=5 // pred_fallthru
        _
    $region6: #{unet_encoder_forward.1} parent=1 // loop_footer
      %s23 = sadd.s32 1, %s19
    $region7: #{unet_encoder_forward.1} parent=1 // loop_footer_branch
      %18 = sbr.rel target = $region3
    $region8: #{unet_encoder_forward.1} parent=1 // loop_exit
      _
    %1964 = vsyncpa [#allocation6], 1
    %s1965 = scalar_lea.sflag [#allocation6], 1
    %1966 = vsyncpa %s1965, 1
    %1967 = vsyncpa [#allocation8], 1
    %s1968 = scalar_lea.sflag [#allocation8], 1
    %1969 = vsyncpa %s1968, 1

</llo_original>
